<compile_context>
chip_gen: v5e
topology: v5e:2x2
jax: 0.10.0
libtpu: 0.0.40
codegen_flags: <defaults>
</compile_context>

<pallas_src>
import functools

import jax
import jax.numpy as jnp
from jax.experimental import pallas as pl
from jax.experimental.pallas import tpu as pltpu


# --------------------------- parameter / filter glue ---------------------------

def _build_sinc_filter(coef_freq, coef_bandwidth, *, kernel_size, srate,
                       margin_frequency=0.3, margin_bandwidth=0.05):
    """Mirrors TemporalFilter._create_frequencies + SincLayer2d._create_filters."""
    K = kernel_size
    # _create_frequencies
    freq = margin_frequency + jax.nn.softplus(coef_freq)
    bandwidth = jax.nn.sigmoid(coef_bandwidth) * (1.0 - 2.0 * margin_bandwidth) + margin_bandwidth
    bandwidth = bandwidth * freq
    freq_low = freq - bandwidth / 2.0
    freq_high = freq + bandwidth / 2.0
    # _scale buffer: arange(-K//2 + 1, K//2 + 1) / srate
    scale = jnp.arange((-K) // 2 + 1, K // 2 + 1, dtype=jnp.float32) / srate      # (K,)
    # torch.hamming_window default (periodic=True, alpha=0.54, beta=0.46)
    n = jnp.arange(K, dtype=jnp.float32)
    hamming = 0.54 - 0.46 * jnp.cos(2.0 * jnp.pi * n / K)                         # (K,)
    # _create_filters  (jnp.sinc == torch.special.sinc: sin(pi x)/(pi x), sinc(0)=1)
    fl = freq_low[:, None]
    fh = freq_high[:, None]
    filt_low = fl * jnp.sinc(2.0 * fl * scale[None, :])
    filt_high = fh * jnp.sinc(2.0 * fh * scale[None, :])
    filt = hamming[None, :] * 2.0 * (filt_high - filt_low) / srate                # (C_out, K)
    return filt.astype(jnp.float32)


# --------------------------------- Pallas kernel --------------------------------

def _sinc_fir_kernel(filt_ref, x_ref, o_ref, xpad_ref, *, K, W, mult, pad_left, chunk):
    # filt_ref: SMEM (C_out * K,)              flat filter bank, scalar reads
    # x_ref:    VMEM (Bb, 1, TH, W)            input-channel tile(s), no halo
    # o_ref:    VMEM (Bb, mult, TH, W)         every output channel fed by this input channel
    # xpad_ref: VMEM (TH, W + K - 1) f32       staging scratch with the 'same' zero halo
    c = pl.program_id(1)
    Bb = x_ref.shape[0]
    th = x_ref.shape[2]
    pad_right = K - 1 - pad_left
    out_dtype = o_ref.dtype

    # Hoist all K*mult scalar coefficient reads out of the MAC loops.
    fbase = c * (mult * K)
    coef = [[filt_ref[fbase + m * K + k] for k in range(K)] for m in range(mult)]

    n_full = th // chunk
    tail = th - n_full * chunk

    def process_batch(b):
        # Stage the tile once into the lane-padded scratch (replaces the old
        # per-tap roll + iota + select masking).  The halo columns are re-zeroed
        # every grid step: the scratch is per-core state and the "parallel" grid
        # axes may be sharded across TensorCores, so a first-step-only init is
        # not safe.  The halo is only K-1 lanes -> negligible cost.
        xv = x_ref[b, 0]
        if xv.dtype != jnp.float32:
            xv = xv.astype(jnp.float32)
        xpad_ref[:, pl.ds(pad_left, W)] = xv
        if pad_left > 0:
            xpad_ref[:, pl.ds(0, pad_left)] = jnp.zeros((th, pad_left), jnp.float32)
        if pad_right > 0:
            xpad_ref[:, pl.ds(pad_left + W, pad_right)] = jnp.zeros((th, pad_right), jnp.float32)

        def do_rows(r0, nrows):
            # Register-blocked FIR: one shifted tap + `mult` f32 accumulators
            # of shape (nrows, W) live in vregs; tap k is a lane-offset slice
            # of the zero-padded scratch (no masking, no wrap-around issues
            # even when K - 1 >= W).
            t = xpad_ref[pl.ds(r0, nrows), pl.ds(0, W)]
            accs = [coef[m][0] * t for m in range(mult)]              # tap 0 initialises
            for k in range(1, K):
                t = xpad_ref[pl.ds(r0, nrows), pl.ds(k, W)]
                for m in range(mult):
                    accs[m] = accs[m] + coef[m][k] * t
            for m in range(mult):
                v = accs[m]
                if v.dtype != out_dtype:
                    v = v.astype(out_dtype)
                o_ref[b, m, pl.ds(r0, nrows), :] = v                  # lane-dense store

        @pl.loop(0, n_full)
        def _(i):
            r0 = i * chunk
            if chunk % 8 == 0:
                r0 = pl.multiple_of(r0, 8)
            do_rows(r0, chunk)

        if tail:
            do_rows(n_full * chunk, tail)

    for b in range(Bb):            # static; Bb == 1 unless batch is folded into the block
        process_batch(b)


# ----------------------------------- wrapper ------------------------------------

def _choose_h_tile(H, W, K, mult, itemsize, b_block, *,
                   target_in_bytes=1 << 20, vmem_budget_bytes=22 << 20):
    # Input block capped at ~1 MiB (>=512 KiB already reaches ~85% of the HBM
    # roofline); double-buffered in/out blocks + the f32 staging scratch kept
    # well under the 32 MiB scoped-VMEM limit on every generation (incl. v7x).
    per_row_in = b_block * W * itemsize
    per_row_total = 2 * (1 + mult) * b_block * W * itemsize + (W + K - 1) * 4
    th = min(target_in_bytes // max(per_row_in, 1),
             vmem_budget_bytes // max(per_row_total, 1))
    th = max(8, (th // 8) * 8)
    return int(min(H, th))


def _choose_row_chunk(W, mult, *, vreg_budget_bytes=160 * 1024):
    # Rows per register-blocked chunk: (tap + mult accumulators + temp) must fit
    # comfortably in the 64 x 4 KiB vreg file.
    per_row = (mult + 2) * W * 4
    chunk = (vreg_budget_bytes // max(per_row, 1)) // 8 * 8
    return int(max(8, min(32, chunk)))


def sinc_layer_2d_forward(x, coef_freq, coef_bandwidth, *, kernel_size, srate,
                          margin_frequency=0.3, margin_bandwidth=0.05,
                          h_tile=None):
    B, C_in, H, W_in = x.shape
    C_out = coef_freq.shape[0]
    assert C_out % C_in == 0, "grouped conv requires C_out % C_in == 0"
    mult = C_out // C_in
    K = kernel_size

    filt = _build_sinc_filter(coef_freq, coef_bandwidth, kernel_size=K, srate=srate,
                              margin_frequency=margin_frequency,
                              margin_bandwidth=margin_bandwidth)                  # (C_out, K)
    filt_flat = filt.reshape(-1)     # 1-D SMEM: avoids 2-D SMEM word padding

    # TemporalPad(padding='same', dim='2d', padding_mode='zeros', hilbert=False):
    # zero 'same' padding along the time (last) axis, applied via the in-kernel
    # padded scratch (no padded HBM copy of x).
    # TODO(synk): TemporalPad source not provided; left/right split assumed
    # ((K-1)//2, K//2), exact (and symmetric) for odd K.
    pad_left = (K - 1) // 2

    # Lane-dense output stores: pad W up to a multiple of 128.  The appended
    # zeros are exactly what the 'same' zero padding supplies, so out[..., :W_in]
    # is bit-identical to the unpadded computation.
    W = ((W_in + 127) // 128) * 128
    if W != W_in:
        x = jnp.pad(x, ((0, 0), (0, 0), (0, 0), (0, W - W_in)))

    itemsize = x.dtype.itemsize
    # Fold the batch into the block only when a single (H, W) slab is tiny, so
    # blocks stay large; otherwise batch is a grid axis (more blocks for the
    # two v7x TensorCores).
    per_bc_bytes = H * W * itemsize
    b_block = B if (B > 1 and per_bc_bytes < (512 << 10)) else 1
    n_b = B // b_block

    if h_tile is None:
        h_tile = _choose_h_tile(H, W, K, mult, itemsize, b_block)
    th = int(min(h_tile, H))
    n_h = pl.cdiv(H, th)
    chunk = min(_choose_row_chunk(W, mult), th)

    # VMEM accounting: double-buffered in/out blocks + staging scratch.
    in_block = b_block * th * W * itemsize
    out_block = mult * in_block
    scratch_bytes = th * (W + K - 1) * 4
    est = 2 * (in_block + out_block) + scratch_bytes + (1 << 20)
    vmem_limit = int(min(112 << 20, max(32 << 20, est * 3 // 2)))

    kernel = functools.partial(_sinc_fir_kernel, K=K, W=W, mult=mult,
                               pad_left=pad_left, chunk=chunk)

    out = pl.pallas_call(
        kernel,
        out_shape=jax.ShapeDtypeStruct((B, C_out, H, W), x.dtype),
        grid=(n_b, C_in, n_h),
        in_specs=[
            # whole (tiny) filter bank resident in SMEM, read as scalars
            pl.BlockSpec(memory_space=pltpu.MemorySpace.SMEM),
            # one input-channel tile per step; each block fetched exactly once overall
            pl.BlockSpec((b_block, 1, th, W), lambda b, c, h: (b, c, h, 0)),
        ],
        # all `mult` output channels that share this input channel, written together
        out_specs=pl.BlockSpec((b_block, mult, th, W), lambda b, c, h: (b, c, h, 0)),
        scratch_shapes=[pltpu.VMEM((th, W + K - 1), jnp.float32)],
        compiler_params=pltpu.CompilerParams(
            dimension_semantics=("parallel", "parallel", "parallel"),
            vmem_limit_bytes=vmem_limit,
        ),
    )(filt_flat, x)

    if W != W_in:
        out = out[..., :W_in]
    return out


# ------------------------------------ main --------------------------------------

if __name__ == "__main__":
    srate = 100.0
    fmin_init, fmax_init = 1.0, 40.0

    def run_case(key, B, C_in, C_out, H, W, K, h_tile=None):
        kx, kf, kb = jax.random.split(key, 3)
        x = jax.random.normal(kx, (B, C_in, H, W), dtype=jnp.float32)
        # deterministic parameter init mirroring _create_parameters_freq / _bandwidth
        coef_freq = fmin_init + jax.random.uniform(kf, (C_out,), dtype=jnp.float32) * (fmax_init - fmin_init)
        u = jax.random.uniform(kb, (C_out,), dtype=jnp.float32) * 0.95 + 0.025
        coef_bandwidth = jnp.log(u / (1.0 - u))

        out = sinc_layer_2d_forward(x, coef_freq, coef_bandwidth,
                                    kernel_size=K, srate=srate, h_tile=h_tile)
        out = jax.block_until_ready(out)
        assert out.shape == (B, C_out, H, W)

        # independent reference: XLA grouped conv == torch F.conv2d(..., groups=C_in)
        filt = _build_sinc_filter(coef_freq, coef_bandwidth, kernel_size=K, srate=srate)
        pad_left, pad_right = (K - 1) // 2, K // 2
        ref = jax.lax.conv_general_dilated(
            x, filt.reshape(C_out, 1, 1, K),
            window_strides=(1, 1),
            padding=((0, 0), (pad_left, pad_right)),
            dimension_numbers=("NCHW", "OIHW", "NCHW"),
            feature_group_count=C_in,
            precision=jax.lax.Precision.HIGHEST)
        err = float(jnp.max(jnp.abs(out - ref)))
        assert jnp.allclose(out, ref, rtol=2e-5, atol=2e-5), err

    key = jax.random.PRNGKey(0)
    k1, k2, k3, k4, k5 = jax.random.split(key, 5)
    # batch folded into the block (small H*W), mult = 2
    run_case(k1, B=2, C_in=2, C_out=4, H=16, W=256, K=9)
    # full-H block with H < 8 (block == full dim), mult = 3
    run_case(k2, B=1, C_in=3, C_out=9, H=5, W=128, K=7)
    # W not a multiple of 128 (wrapper pad + slice), multi H-tile, mult = 1
    run_case(k3, B=1, C_in=2, C_out=2, H=24, W=96, K=5, h_tile=8)
    # batch as a grid axis (large H*W slab), multi-chunk in-kernel pl.loop
    run_case(k4, B=2, C_in=1, C_out=2, H=128, W=1024, K=9)
    # partial last H tile (H % h_tile != 0)
    run_case(k5, B=1, C_in=2, C_out=4, H=20, W=128, K=9, h_tile=16)
    print("KERNEL_OK")
</pallas_src>

<mosaic_0001>
module attributes {stable_mosaic.version = 11 : i64} {
  func.func @_sinc_fir_kernel(%arg0: i32, %arg1: i32, %arg2: i32, %arg3: memref<36xf32, #tpu.memory_space<smem>>, %arg4: memref<2x1x16x256xf32, #tpu.memory_space<vmem>>, %arg5: memref<2x2x16x256xf32, #tpu.memory_space<vmem>>, %arg6: memref<16x264xf32, #tpu.memory_space<vmem>>) attributes {dimension_semantics = [#tpu.dimension_semantics<parallel>, #tpu.dimension_semantics<parallel>, #tpu.dimension_semantics<parallel>], iteration_bounds = array<i64: 1, 2, 1>, scalar_prefetch = 0 : i64, scratch_operands = 1 : i64, tpu.core_type = #tpu.core_type<tc>, window_params = [{transform_indices = @transform_0, window_bounds = array<i64: 36>}, {transform_indices = @transform_1, window_bounds = array<i64: 2, 1, 16, 256>}, {transform_indices = @transform_2, window_bounds = array<i64: 2, 2, 16, 256>}]} {
    %c18_i32 = arith.constant 18 : i32
    %0 = arith.muli %arg1, %c18_i32 : i32
    %c0_i32 = arith.constant 0 : i32
    %1 = arith.addi %0, %c0_i32 : i32
    %c0_i32_0 = arith.constant 0 : i32
    %2 = arith.addi %1, %c0_i32_0 : i32
    %3 = arith.index_cast %2 : i32 to index
    %4 = memref.load %arg3[%3] : memref<36xf32, #tpu.memory_space<smem>>
    %c0_i32_1 = arith.constant 0 : i32
    %5 = arith.addi %0, %c0_i32_1 : i32
    %c1_i32 = arith.constant 1 : i32
    %6 = arith.addi %5, %c1_i32 : i32
    %7 = arith.index_cast %6 : i32 to index
    %8 = memref.load %arg3[%7] : memref<36xf32, #tpu.memory_space<smem>>
    %c0_i32_2 = arith.constant 0 : i32
    %9 = arith.addi %0, %c0_i32_2 : i32
    %c2_i32 = arith.constant 2 : i32
    %10 = arith.addi %9, %c2_i32 : i32
    %11 = arith.index_cast %10 : i32 to index
    %12 = memref.load %arg3[%11] : memref<36xf32, #tpu.memory_space<smem>>
    %c0_i32_3 = arith.constant 0 : i32
    %13 = arith.addi %0, %c0_i32_3 : i32
    %c3_i32 = arith.constant 3 : i32
    %14 = arith.addi %13, %c3_i32 : i32
    %15 = arith.index_cast %14 : i32 to index
    %16 = memref.load %arg3[%15] : memref<36xf32, #tpu.memory_space<smem>>
    %c0_i32_4 = arith.constant 0 : i32
    %17 = arith.addi %0, %c0_i32_4 : i32
    %c4_i32 = arith.constant 4 : i32
    %18 = arith.addi %17, %c4_i32 : i32
    %19 = arith.index_cast %18 : i32 to index
    %20 = memref.load %arg3[%19] : memref<36xf32, #tpu.memory_space<smem>>
    %c0_i32_5 = arith.constant 0 : i32
    %21 = arith.addi %0, %c0_i32_5 : i32
    %c5_i32 = arith.constant 5 : i32
    %22 = arith.addi %21, %c5_i32 : i32
    %23 = arith.index_cast %22 : i32 to index
    %24 = memref.load %arg3[%23] : memref<36xf32, #tpu.memory_space<smem>>
    %c0_i32_6 = arith.constant 0 : i32
    %25 = arith.addi %0, %c0_i32_6 : i32
    %c6_i32 = arith.constant 6 : i32
    %26 = arith.addi %25, %c6_i32 : i32
    %27 = arith.index_cast %26 : i32 to index
    %28 = memref.load %arg3[%27] : memref<36xf32, #tpu.memory_space<smem>>
    %c0_i32_7 = arith.constant 0 : i32
    %29 = arith.addi %0, %c0_i32_7 : i32
    %c7_i32 = arith.constant 7 : i32
    %30 = arith.addi %29, %c7_i32 : i32
    %31 = arith.index_cast %30 : i32 to index
    %32 = memref.load %arg3[%31] : memref<36xf32, #tpu.memory_space<smem>>
    %c0_i32_8 = arith.constant 0 : i32
    %33 = arith.addi %0, %c0_i32_8 : i32
    %c8_i32 = arith.constant 8 : i32
    %34 = arith.addi %33, %c8_i32 : i32
    %35 = arith.index_cast %34 : i32 to index
    %36 = memref.load %arg3[%35] : memref<36xf32, #tpu.memory_space<smem>>
    %c9_i32 = arith.constant 9 : i32
    %37 = arith.addi %0, %c9_i32 : i32
    %c0_i32_9 = arith.constant 0 : i32
    %38 = arith.addi %37, %c0_i32_9 : i32
    %39 = arith.index_cast %38 : i32 to index
    %40 = memref.load %arg3[%39] : memref<36xf32, #tpu.memory_space<smem>>
    %c9_i32_10 = arith.constant 9 : i32
    %41 = arith.addi %0, %c9_i32_10 : i32
    %c1_i32_11 = arith.constant 1 : i32
    %42 = arith.addi %41, %c1_i32_11 : i32
    %43 = arith.index_cast %42 : i32 to index
    %44 = memref.load %arg3[%43] : memref<36xf32, #tpu.memory_space<smem>>
    %c9_i32_12 = arith.constant 9 : i32
    %45 = arith.addi %0, %c9_i32_12 : i32
    %c2_i32_13 = arith.constant 2 : i32
    %46 = arith.addi %45, %c2_i32_13 : i32
    %47 = arith.index_cast %46 : i32 to index
    %48 = memref.load %arg3[%47] : memref<36xf32, #tpu.memory_space<smem>>
    %c9_i32_14 = arith.constant 9 : i32
    %49 = arith.addi %0, %c9_i32_14 : i32
    %c3_i32_15 = arith.constant 3 : i32
    %50 = arith.addi %49, %c3_i32_15 : i32
    %51 = arith.index_cast %50 : i32 to index
    %52 = memref.load %arg3[%51] : memref<36xf32, #tpu.memory_space<smem>>
    %c9_i32_16 = arith.constant 9 : i32
    %53 = arith.addi %0, %c9_i32_16 : i32
    %c4_i32_17 = arith.constant 4 : i32
    %54 = arith.addi %53, %c4_i32_17 : i32
    %55 = arith.index_cast %54 : i32 to index
    %56 = memref.load %arg3[%55] : memref<36xf32, #tpu.memory_space<smem>>
    %c9_i32_18 = arith.constant 9 : i32
    %57 = arith.addi %0, %c9_i32_18 : i32
    %c5_i32_19 = arith.constant 5 : i32
    %58 = arith.addi %57, %c5_i32_19 : i32
    %59 = arith.index_cast %58 : i32 to index
    %60 = memref.load %arg3[%59] : memref<36xf32, #tpu.memory_space<smem>>
    %c9_i32_20 = arith.constant 9 : i32
    %61 = arith.addi %0, %c9_i32_20 : i32
    %c6_i32_21 = arith.constant 6 : i32
    %62 = arith.addi %61, %c6_i32_21 : i32
    %63 = arith.index_cast %62 : i32 to index
    %64 = memref.load %arg3[%63] : memref<36xf32, #tpu.memory_space<smem>>
    %c9_i32_22 = arith.constant 9 : i32
    %65 = arith.addi %0, %c9_i32_22 : i32
    %c7_i32_23 = arith.constant 7 : i32
    %66 = arith.addi %65, %c7_i32_23 : i32
    %67 = arith.index_cast %66 : i32 to index
    %68 = memref.load %arg3[%67] : memref<36xf32, #tpu.memory_space<smem>>
    %c9_i32_24 = arith.constant 9 : i32
    %69 = arith.addi %0, %c9_i32_24 : i32
    %c8_i32_25 = arith.constant 8 : i32
    %70 = arith.addi %69, %c8_i32_25 : i32
    %71 = arith.index_cast %70 : i32 to index
    %72 = memref.load %arg3[%71] : memref<36xf32, #tpu.memory_space<smem>>
    %c0 = arith.constant 0 : index
    %c0_26 = arith.constant 0 : index
    %c0_27 = arith.constant 0 : index
    %c0_28 = arith.constant 0 : index
    %73 = vector.load %arg4[%c0, %c0_26, %c0_27, %c0_28] : memref<2x1x16x256xf32, #tpu.memory_space<vmem>>, vector<1x1x16x256xf32>
    %74 = vector.shape_cast %73 : vector<1x1x16x256xf32> to vector<16x256xf32>
    %c0_29 = arith.constant 0 : index
    %c4 = arith.constant 4 : index
    %75 = vector.load %arg6[%c0_29, %c4] : memref<16x264xf32, #tpu.memory_space<vmem>>, vector<16x256xf32>
    tpu.vector_store %arg6[%c0_29, %c4], %74 {strides = array<i32>} : memref<16x264xf32, #tpu.memory_space<vmem>>, vector<16x256xf32>,
    %cst = arith.constant 0.000000e+00 : f32
    %76 = vector.broadcast %cst : f32 to vector<16x4xf32>
    %c0_30 = arith.constant 0 : index
    %c0_31 = arith.constant 0 : index
    %77 = vector.load %arg6[%c0_30, %c0_31] : memref<16x264xf32, #tpu.memory_space<vmem>>, vector<16x4xf32>
    tpu.vector_store %arg6[%c0_30, %c0_31], %76 {strides = array<i32>} : memref<16x264xf32, #tpu.memory_space<vmem>>, vector<16x4xf32>,
    %cst_32 = arith.constant 0.000000e+00 : f32
    %78 = vector.broadcast %cst_32 : f32 to vector<16x4xf32>
    %c0_33 = arith.constant 0 : index
    %c260 = arith.constant 260 : index
    %79 = vector.load %arg6[%c0_33, %c260] : memref<16x264xf32, #tpu.memory_space<vmem>>, vector<16x4xf32>
    tpu.vector_store %arg6[%c0_33, %c260], %78 {strides = array<i32>} : memref<16x264xf32, #tpu.memory_space<vmem>>, vector<16x4xf32>,
    %c0_i32_34 = arith.constant 0 : i32
    %c1_i32_35 = arith.constant 1 : i32
    %80 = arith.muli %c0_i32_34, %c1_i32_35 : i32
    %c0_i32_36 = arith.constant 0 : i32
    %81 = arith.addi %c0_i32_36, %80 : i32
    %c16_i32 = arith.constant 16 : i32
    %82 = arith.muli %81, %c16_i32 : i32
    %83 = tpu.assume_multiple %82, 8 : i32
    %84 = arith.index_cast %83 : i32 to index
    %c0_37 = arith.constant 0 : index
    %85 = vector.load %arg6[%84, %c0_37] : memref<16x264xf32, #tpu.memory_space<vmem>>, vector<16x256xf32>
    %86 = vector.broadcast %4 : f32 to vector<16x256xf32>
    %87 = arith.mulf %86, %85 : vector<16x256xf32>
    %88 = vector.broadcast %40 : f32 to vector<16x256xf32>
    %89 = arith.mulf %88, %85 : vector<16x256xf32>
    %90 = arith.index_cast %83 : i32 to index
    %c1 = arith.constant 1 : index
    %91 = vector.load %arg6[%90, %c1] : memref<16x264xf32, #tpu.memory_space<vmem>>, vector<16x256xf32>
    %92 = vector.broadcast %8 : f32 to vector<16x256xf32>
    %93 = arith.mulf %92, %91 : vector<16x256xf32>
    %94 = arith.addf %87, %93 : vector<16x256xf32>
    %95 = vector.broadcast %44 : f32 to vector<16x256xf32>
    %96 = arith.mulf %95, %91 : vector<16x256xf32>
    %97 = arith.addf %89, %96 : vector<16x256xf32>
    %98 = arith.index_cast %83 : i32 to index
    %c2 = arith.constant 2 : index
    %99 = vector.load %arg6[%98, %c2] : memref<16x264xf32, #tpu.memory_space<vmem>>, vector<16x256xf32>
    %100 = vector.broadcast %12 : f32 to vector<16x256xf32>
    %101 = arith.mulf %100, %99 : vector<16x256xf32>
    %102 = arith.addf %94, %101 : vector<16x256xf32>
    %103 = vector.broadcast %48 : f32 to vector<16x256xf32>
    %104 = arith.mulf %103, %99 : vector<16x256xf32>
    %105 = arith.addf %97, %104 : vector<16x256xf32>
    %106 = arith.index_cast %83 : i32 to index
    %c3 = arith.constant 3 : index
    %107 = vector.load %arg6[%106, %c3] : memref<16x264xf32, #tpu.memory_space<vmem>>, vector<16x256xf32>
    %108 = vector.broadcast %16 : f32 to vector<16x256xf32>
    %109 = arith.mulf %108, %107 : vector<16x256xf32>
    %110 = arith.addf %102, %109 : vector<16x256xf32>
    %111 = vector.broadcast %52 : f32 to vector<16x256xf32>
    %112 = arith.mulf %111, %107 : vector<16x256xf32>
    %113 = arith.addf %105, %112 : vector<16x256xf32>
    %114 = arith.index_cast %83 : i32 to index
    %c4_38 = arith.constant 4 : index
    %115 = vector.load %arg6[%114, %c4_38] : memref<16x264xf32, #tpu.memory_space<vmem>>, vector<16x256xf32>
    %116 = vector.broadcast %20 : f32 to vector<16x256xf32>
    %117 = arith.mulf %116, %115 : vector<16x256xf32>
    %118 = arith.addf %110, %117 : vector<16x256xf32>
    %119 = vector.broadcast %56 : f32 to vector<16x256xf32>
    %120 = arith.mulf %119, %115 : vector<16x256xf32>
    %121 = arith.addf %113, %120 : vector<16x256xf32>
    %122 = arith.index_cast %83 : i32 to index
    %c5 = arith.constant 5 : index
    %123 = vector.load %arg6[%122, %c5] : memref<16x264xf32, #tpu.memory_space<vmem>>, vector<16x256xf32>
    %124 = vector.broadcast %24 : f32 to vector<16x256xf32>
    %125 = arith.mulf %124, %123 : vector<16x256xf32>
    %126 = arith.addf %118, %125 : vector<16x256xf32>
    %127 = vector.broadcast %60 : f32 to vector<16x256xf32>
    %128 = arith.mulf %127, %123 : vector<16x256xf32>
    %129 = arith.addf %121, %128 : vector<16x256xf32>
    %130 = arith.index_cast %83 : i32 to index
    %c6 = arith.constant 6 : index
    %131 = vector.load %arg6[%130, %c6] : memref<16x264xf32, #tpu.memory_space<vmem>>, vector<16x256xf32>
    %132 = vector.broadcast %28 : f32 to vector<16x256xf32>
    %133 = arith.mulf %132, %131 : vector<16x256xf32>
    %134 = arith.addf %126, %133 : vector<16x256xf32>
    %135 = vector.broadcast %64 : f32 to vector<16x256xf32>
    %136 = arith.mulf %135, %131 : vector<16x256xf32>
    %137 = arith.addf %129, %136 : vector<16x256xf32>
    %138 = arith.index_cast %83 : i32 to index
    %c7 = arith.constant 7 : index
    %139 = vector.load %arg6[%138, %c7] : memref<16x264xf32, #tpu.memory_space<vmem>>, vector<16x256xf32>
    %140 = vector.broadcast %32 : f32 to vector<16x256xf32>
    %141 = arith.mulf %140, %139 : vector<16x256xf32>
    %142 = arith.addf %134, %141 : vector<16x256xf32>
    %143 = vector.broadcast %68 : f32 to vector<16x256xf32>
    %144 = arith.mulf %143, %139 : vector<16x256xf32>
    %145 = arith.addf %137, %144 : vector<16x256xf32>
    %146 = arith.index_cast %83 : i32 to index
    %c8 = arith.constant 8 : index
    %147 = vector.load %arg6[%146, %c8] : memref<16x264xf32, #tpu.memory_space<vmem>>, vector<16x256xf32>
    %148 = vector.broadcast %36 : f32 to vector<16x256xf32>
    %149 = arith.mulf %148, %147 : vector<16x256xf32>
    %150 = arith.addf %142, %149 : vector<16x256xf32>
    %151 = vector.broadcast %72 : f32 to vector<16x256xf32>
    %152 = arith.mulf %151, %147 : vector<16x256xf32>
    %153 = arith.addf %145, %152 : vector<16x256xf32>
    %c0_39 = arith.constant 0 : index
    %c0_40 = arith.constant 0 : index
    %154 = arith.index_cast %83 : i32 to index
    %c0_41 = arith.constant 0 : index
    %155 = vector.load %arg5[%c0_39, %c0_40, %154, %c0_41] : memref<2x2x16x256xf32, #tpu.memory_space<vmem>>, vector<1x1x16x256xf32>
    %156 = vector.shape_cast %155 : vector<1x1x16x256xf32> to vector<16x256xf32>
    %157 = vector.shape_cast %150 : vector<16x256xf32> to vector<1x1x16x256xf32>
    tpu.vector_store %arg5[%c0_39, %c0_40, %154, %c0_41], %157 {strides = array<i32>} : memref<2x2x16x256xf32, #tpu.memory_space<vmem>>, vector<1x1x16x256xf32>,
    %c0_42 = arith.constant 0 : index
    %c1_43 = arith.constant 1 : index
    %158 = arith.index_cast %83 : i32 to index
    %c0_44 = arith.constant 0 : index
    %159 = vector.load %arg5[%c0_42, %c1_43, %158, %c0_44] : memref<2x2x16x256xf32, #tpu.memory_space<vmem>>, vector<1x1x16x256xf32>
    %160 = vector.shape_cast %159 : vector<1x1x16x256xf32> to vector<16x256xf32>
    %161 = vector.shape_cast %153 : vector<16x256xf32> to vector<1x1x16x256xf32>
    tpu.vector_store %arg5[%c0_42, %c1_43, %158, %c0_44], %161 {strides = array<i32>} : memref<2x2x16x256xf32, #tpu.memory_space<vmem>>, vector<1x1x16x256xf32>,
    %c1_i32_45 = arith.constant 1 : i32
    %c1_46 = arith.constant 1 : index
    %c0_47 = arith.constant 0 : index
    %c0_48 = arith.constant 0 : index
    %c0_49 = arith.constant 0 : index
    %162 = vector.load %arg4[%c1_46, %c0_47, %c0_48, %c0_49] : memref<2x1x16x256xf32, #tpu.memory_space<vmem>>, vector<1x1x16x256xf32>
    %163 = vector.shape_cast %162 : vector<1x1x16x256xf32> to vector<16x256xf32>
    %c0_50 = arith.constant 0 : index
    %c4_51 = arith.constant 4 : index
    %164 = vector.load %arg6[%c0_50, %c4_51] : memref<16x264xf32, #tpu.memory_space<vmem>>, vector<16x256xf32>
    tpu.vector_store %arg6[%c0_50, %c4_51], %163 {strides = array<i32>} : memref<16x264xf32, #tpu.memory_space<vmem>>, vector<16x256xf32>,
    %cst_52 = arith.constant 0.000000e+00 : f32
    %165 = vector.broadcast %cst_52 : f32 to vector<16x4xf32>
    %c0_53 = arith.constant 0 : index
    %c0_54 = arith.constant 0 : index
    %166 = vector.load %arg6[%c0_53, %c0_54] : memref<16x264xf32, #tpu.memory_space<vmem>>, vector<16x4xf32>
    tpu.vector_store %arg6[%c0_53, %c0_54], %165 {strides = array<i32>} : memref<16x264xf32, #tpu.memory_space<vmem>>, vector<16x4xf32>,
    %cst_55 = arith.constant 0.000000e+00 : f32
    %167 = vector.broadcast %cst_55 : f32 to vector<16x4xf32>
    %c0_56 = arith.constant 0 : index
    %c260_57 = arith.constant 260 : index
    %168 = vector.load %arg6[%c0_56, %c260_57] : memref<16x264xf32, #tpu.memory_space<vmem>>, vector<16x4xf32>
    tpu.vector_store %arg6[%c0_56, %c260_57], %167 {strides = array<i32>} : memref<16x264xf32, #tpu.memory_space<vmem>>, vector<16x4xf32>,
    %c0_i32_58 = arith.constant 0 : i32
    %c1_i32_59 = arith.constant 1 : i32
    %169 = arith.muli %c0_i32_58, %c1_i32_59 : i32
    %c0_i32_60 = arith.constant 0 : i32
    %170 = arith.addi %c0_i32_60, %169 : i32
    %c16_i32_61 = arith.constant 16 : i32
    %171 = arith.muli %170, %c16_i32_61 : i32
    %172 = tpu.assume_multiple %171, 8 : i32
    %173 = arith.index_cast %172 : i32 to index
    %c0_62 = arith.constant 0 : index
    %174 = vector.load %arg6[%173, %c0_62] : memref<16x264xf32, #tpu.memory_space<vmem>>, vector<16x256xf32>
    %175 = vector.broadcast %4 : f32 to vector<16x256xf32>
    %176 = arith.mulf %175, %174 : vector<16x256xf32>
    %177 = vector.broadcast %40 : f32 to vector<16x256xf32>
    %178 = arith.mulf %177, %174 : vector<16x256xf32>
    %179 = arith.index_cast %172 : i32 to index
    %c1_63 = arith.constant 1 : index
    %180 = vector.load %arg6[%179, %c1_63] : memref<16x264xf32, #tpu.memory_space<vmem>>, vector<16x256xf32>
    %181 = vector.broadcast %8 : f32 to vector<16x256xf32>
    %182 = arith.mulf %181, %180 : vector<16x256xf32>
    %183 = arith.addf %176, %182 : vector<16x256xf32>
    %184 = vector.broadcast %44 : f32 to vector<16x256xf32>
    %185 = arith.mulf %184, %180 : vector<16x256xf32>
    %186 = arith.addf %178, %185 : vector<16x256xf32>
    %187 = arith.index_cast %172 : i32 to index
    %c2_64 = arith.constant 2 : index
    %188 = vector.load %arg6[%187, %c2_64] : memref<16x264xf32, #tpu.memory_space<vmem>>, vector<16x256xf32>
    %189 = vector.broadcast %12 : f32 to vector<16x256xf32>
    %190 = arith.mulf %189, %188 : vector<16x256xf32>
    %191 = arith.addf %183, %190 : vector<16x256xf32>
    %192 = vector.broadcast %48 : f32 to vector<16x256xf32>
    %193 = arith.mulf %192, %188 : vector<16x256xf32>
    %194 = arith.addf %186, %193 : vector<16x256xf32>
    %195 = arith.index_cast %172 : i32 to index
    %c3_65 = arith.constant 3 : index
    %196 = vector.load %arg6[%195, %c3_65] : memref<16x264xf32, #tpu.memory_space<vmem>>, vector<16x256xf32>
    %197 = vector.broadcast %16 : f32 to vector<16x256xf32>
    %198 = arith.mulf %197, %196 : vector<16x256xf32>
    %199 = arith.addf %191, %198 : vector<16x256xf32>
    %200 = vector.broadcast %52 : f32 to vector<16x256xf32>
    %201 = arith.mulf %200, %196 : vector<16x256xf32>
    %202 = arith.addf %194, %201 : vector<16x256xf32>
    %203 = arith.index_cast %172 : i32 to index
    %c4_66 = arith.constant 4 : index
    %204 = vector.load %arg6[%203, %c4_66] : memref<16x264xf32, #tpu.memory_space<vmem>>, vector<16x256xf32>
    %205 = vector.broadcast %20 : f32 to vector<16x256xf32>
    %206 = arith.mulf %205, %204 : vector<16x256xf32>
    %207 = arith.addf %199, %206 : vector<16x256xf32>
    %208 = vector.broadcast %56 : f32 to vector<16x256xf32>
    %209 = arith.mulf %208, %204 : vector<16x256xf32>
    %210 = arith.addf %202, %209 : vector<16x256xf32>
    %211 = arith.index_cast %172 : i32 to index
    %c5_67 = arith.constant 5 : index
    %212 = vector.load %arg6[%211, %c5_67] : memref<16x264xf32, #tpu.memory_space<vmem>>, vector<16x256xf32>
    %213 = vector.broadcast %24 : f32 to vector<16x256xf32>
    %214 = arith.mulf %213, %212 : vector<16x256xf32>
    %215 = arith.addf %207, %214 : vector<16x256xf32>
    %216 = vector.broadcast %60 : f32 to vector<16x256xf32>
    %217 = arith.mulf %216, %212 : vector<16x256xf32>
    %218 = arith.addf %210, %217 : vector<16x256xf32>
    %219 = arith.index_cast %172 : i32 to index
    %c6_68 = arith.constant 6 : index
    %220 = vector.load %arg6[%219, %c6_68] : memref<16x264xf32, #tpu.memory_space<vmem>>, vector<16x256xf32>
    %221 = vector.broadcast %28 : f32 to vector<16x256xf32>
    %222 = arith.mulf %221, %220 : vector<16x256xf32>
    %223 = arith.addf %215, %222 : vector<16x256xf32>
    %224 = vector.broadcast %64 : f32 to vector<16x256xf32>
    %225 = arith.mulf %224, %220 : vector<16x256xf32>
    %226 = arith.addf %218, %225 : vector<16x256xf32>
    %227 = arith.index_cast %172 : i32 to index
    %c7_69 = arith.constant 7 : index
    %228 = vector.load %arg6[%227, %c7_69] : memref<16x264xf32, #tpu.memory_space<vmem>>, vector<16x256xf32>
    %229 = vector.broadcast %32 : f32 to vector<16x256xf32>
    %230 = arith.mulf %229, %228 : vector<16x256xf32>
    %231 = arith.addf %223, %230 : vector<16x256xf32>
    %232 = vector.broadcast %68 : f32 to vector<16x256xf32>
    %233 = arith.mulf %232, %228 : vector<16x256xf32>
    %234 = arith.addf %226, %233 : vector<16x256xf32>
    %235 = arith.index_cast %172 : i32 to index
    %c8_70 = arith.constant 8 : index
    %236 = vector.load %arg6[%235, %c8_70] : memref<16x264xf32, #tpu.memory_space<vmem>>, vector<16x256xf32>
    %237 = vector.broadcast %36 : f32 to vector<16x256xf32>
    %238 = arith.mulf %237, %236 : vector<16x256xf32>
    %239 = arith.addf %231, %238 : vector<16x256xf32>
    %240 = vector.broadcast %72 : f32 to vector<16x256xf32>
    %241 = arith.mulf %240, %236 : vector<16x256xf32>
    %242 = arith.addf %234, %241 : vector<16x256xf32>
    %c1_71 = arith.constant 1 : index
    %c0_72 = arith.constant 0 : index
    %243 = arith.index_cast %172 : i32 to index
    %c0_73 = arith.constant 0 : index
    %244 = vector.load %arg5[%c1_71, %c0_72, %243, %c0_73] : memref<2x2x16x256xf32, #tpu.memory_space<vmem>>, vector<1x1x16x256xf32>
    %245 = vector.shape_cast %244 : vector<1x1x16x256xf32> to vector<16x256xf32>
    %246 = vector.shape_cast %239 : vector<16x256xf32> to vector<1x1x16x256xf32>
    tpu.vector_store %arg5[%c1_71, %c0_72, %243, %c0_73], %246 {strides = array<i32>} : memref<2x2x16x256xf32, #tpu.memory_space<vmem>>, vector<1x1x16x256xf32>,
    %c1_74 = arith.constant 1 : index
    %c1_75 = arith.constant 1 : index
    %247 = arith.index_cast %172 : i32 to index
    %c0_76 = arith.constant 0 : index
    %248 = vector.load %arg5[%c1_74, %c1_75, %247, %c0_76] : memref<2x2x16x256xf32, #tpu.memory_space<vmem>>, vector<1x1x16x256xf32>
    %249 = vector.shape_cast %248 : vector<1x1x16x256xf32> to vector<16x256xf32>
    %250 = vector.shape_cast %242 : vector<16x256xf32> to vector<1x1x16x256xf32>
    tpu.vector_store %arg5[%c1_74, %c1_75, %247, %c0_76], %250 {strides = array<i32>} : memref<2x2x16x256xf32, #tpu.memory_space<vmem>>, vector<1x1x16x256xf32>,
    %c1_i32_77 = arith.constant 1 : i32
    return
  }
  func.func @transform_0(%arg0: i32, %arg1: i32, %arg2: i32) -> i32 {
    %c0_i32 = arith.constant 0 : i32
    %c0_i32_0 = arith.constant 0 : i32
    return %c0_i32 : i32
  }
  func.func @transform_1(%arg0: i32, %arg1: i32, %arg2: i32) -> (i32, i32, i32, i32) {
    %c0_i32 = arith.constant 0 : i32
    %c0_i32_0 = arith.constant 0 : i32
    return %arg0, %arg1, %arg2, %c0_i32 : i32, i32, i32, i32
  }
  func.func @transform_2(%arg0: i32, %arg1: i32, %arg2: i32) -> (i32, i32, i32, i32) {
    %c0_i32 = arith.constant 0 : i32
    %c0_i32_0 = arith.constant 0 : i32
    return %arg0, %arg1, %arg2, %c0_i32 : i32, i32, i32, i32
  }
}

</mosaic_0001>

<llo_original>
// kernel: tpu_custom_call.1
$region0: #{tpu_custom_call.1}
  #allocation0 [shape = 'u32[]', space=smem, size = 0x4, offset = 0x4, fixed_abs, tag = 'smem constant byte address 0x4 - core index']
  #allocation1 [shape = 'u32[72,128]{1,0:T(1,128)}', space=vmem, size = 0x9000, scoped, tag = 'internal scratch']
  #allocation2 [shape = 'f32[16,264]{1,0:T(8,128)}', space=vmem, size = 0x6000, scoped, tag = 'scratch operand']
  #allocation9 [shape = 's32[]', space=sflag, size = 0x4, offset = 0, fixed_abs, tag = 'sflag constant byte address 0x0 - dummy sync flag']
  #allocation11 [shape = 's32[]', space=sflag, size = 0x4, offset = 0, fixed_abs, tag = 'sflag constant byte address 0x0 - dummy sync flag']
  %s0 = inlined_call_operand.hbm [shape: f32[36], index: 0, kind: input, shape index: {}]
  %s1 = inlined_call_operand.hbm [shape: f32[2,2,16,256], index: 1, kind: input, shape index: {}]
  %s2 = inlined_call_operand.hbm [shape: f32[2,4,16,256], index: 2, kind: output, shape index: {}]
  %s3 = sld [smem:[#allocation0]]
  $region49: #{tpu_custom_call.1} parent=0
    _
  %s5 = ssub.s32 1, %s3
  %s6 = scalar_select 0, %s5, %s3
  $region1: #{tpu_custom_call.1} parent=0
    #allocation3 [shape = 'u8[512]{0}', space=smem, size = 0x200, scoped, tag = 'input window, operand 0, single buffered']
    #allocation4 [shape = 's32[2]{0}', space=sflag, size = 0x8, scoped, tag = 'scoped memory for tpu_custom_call.1']
    #allocation5 [shape = 's32[2]{0}', space=sflag, size = 0x8, scoped, tag = 'scoped memory for tpu_custom_call.1']
    #allocation6 [shape = 's32[2]{0}', space=sflag, size = 0x8, scoped, tag = 'scoped memory for tpu_custom_call.1']
    #allocation7 [shape = 'u8[65536]{0}', space=vmem, size = 0x10000, scoped, tag = 'input window, operand 1']
    #allocation8 [shape = 'u8[131072]{0}', space=vmem, size = 0x20000, scoped, tag = 'output window, operand 0']
    %7 = vsyncpa [#allocation6], 0
    %8 = vsyncpa [#allocation4], 0
    %s9 = scalar_lea.sflag [#allocation4], 1
    %10 = vsyncpa %s9, 0
    %11 = vsyncpa [#allocation5], 0
    %s12 = scalar_lea.sflag [#allocation5], 1
    %13 = vsyncpa %s12, 0
    loop: start=0, step=1, limit=4
    $region2: #{tpu_custom_call.1} parent=1 // loop_pre_header
      _
    $region3: #{tpu_custom_call.1} parent=1 // loop_header
      %s15 = sphi 0, %s19
      %p16 = scmp.ge.s32.totalorder %s15, 4
      %s22 = sphi 0, %s41
      %s23 = sphi 0, %s37
      %s24 = sphi 0, %s33
      %s25 = sphi 0, %s22
      %s26 = sphi 0, %s23
      %s27 = sphi 0, %s24
      %s28 = sphi 0, %s25
      %s29 = sphi 0, %s26
      %s30 = sphi 0, %s27
      %s42 = sphi 0, %s42
      %s44 = sphi 0, %s42
      %s45 = sphi 0, %s44
      %s59 = sphi 0, %s45
      %s69 = sphi 0, %s71
      %s72 = sphi 0, %s69
      %s73 = sphi 0, %s72
      %s89 = sphi 0, %s73
      %s99 = sphi 0, %s101
      %s102 = sphi 0, %s99
      %s103 = sphi 0, %s102
      %s119 = sphi 0, %s103
    $region4: #{tpu_custom_call.1} parent=1 // loop_header_branch
      %18 = sbr.rel (%p16) target = $region8
    $region5: #{tpu_custom_call.1} parent=1 // loop_body
      %s20 = ssub.s32 %s15, 1
      %s21 = ssub.s32 %s15, 2
      %s31 = sadd.s32 1, %s24
      %p32 = scmp.ge.s32.totalorder %s31, 1
      %s33 = scalar_select %p32, 0, %s31
      %s34 = sadd.s32 1, %s23
      %s35 = scalar_select %p32, %s34, %s23
      %p36 = scmp.ge.s32.totalorder %s35, 2
      %s37 = scalar_select %p36, 0, %s35
      %s38 = sadd.s32 1, %s22
      %s39 = scalar_select %p36, %s38, %s22
      %p40 = scmp.ge.s32.totalorder %s39, 1
      %s41 = scalar_select %p40, 0, %s39
      %s43 = sadd.s32 %s42, 1
      %p46 = scmp.eq.s32.totalorder %s15, 1
      %p47 = scmp.ne.s32.totalorder %s42, %s44
      %p48 = scmp.eq.s32.totalorder %s15, 0
      %p49 = por %p47, %p48
      %p50 = scmp.ne.s32.totalorder %s42, %s44
      %p51 = scmp.eq.s32.totalorder %s20, 1
      %p52 = por %p50, %p51
      %p53 = scmp.ne.s32.totalorder %s44, %s45
      %p54 = scmp.eq.s32.totalorder %s20, 0
      %p55 = por %p53, %p54
      %p56 = scmp.ne.s32.totalorder %s44, %s45
      %p57 = scmp.eq.s32.totalorder %s21, 1
      %p58 = por %p56, %p57
      %p60 = scmp.ne.s32.totalorder %s45, %s59
      %p61 = scmp.eq.s32.totalorder %s21, 0
      %p62 = por %p60, %p61
      %s63 = ssub.s32 %s22, %s41
      %s64 = ssub.s32 %s23, %s37
      %s65 = sor.u32 %s63, %s64
      %s66 = ssub.s32 %s24, %s33
      %s67 = sor.u32 %s65, %s66
      %p68 = scmp.eq.s32.totalorder %s67, 0
      %s70 = sadd.s32 %s69, 1
      %s71 = scalar_select %p68, %s69, %s70
      %p74 = pneg %p68
      %p75 = scmp.eq.s32.totalorder %s15, 1
      %p76 = por %p74, %p75
      %p77 = scmp.ne.s32.totalorder %s69, %s72
      %p78 = scmp.eq.s32.totalorder %s15, 0
      %p79 = por %p77, %p78
      %p80 = scmp.ne.s32.totalorder %s69, %s72
      %p81 = scmp.eq.s32.totalorder %s20, 1
      %p82 = por %p80, %p81
      %p83 = scmp.ne.s32.totalorder %s72, %s73
      %p84 = scmp.eq.s32.totalorder %s20, 0
      %p85 = por %p83, %p84
      %p86 = scmp.ne.s32.totalorder %s72, %s73
      %p87 = scmp.eq.s32.totalorder %s21, 1
      %p88 = por %p86, %p87
      %p90 = scmp.ne.s32.totalorder %s73, %s89
      %p91 = scmp.eq.s32.totalorder %s21, 0
      %p92 = por %p90, %p91
      %s93 = ssub.s32 %s22, %s41
      %s94 = ssub.s32 %s23, %s37
      %s95 = sor.u32 %s93, %s94
      %s96 = ssub.s32 %s24, %s33
      %s97 = sor.u32 %s95, %s96
      %p98 = scmp.eq.s32.totalorder %s97, 0
      %s100 = sadd.s32 %s99, 1
      %s101 = scalar_select %p98, %s99, %s100
      %p104 = pneg %p98
      %p105 = scmp.eq.s32.totalorder %s15, 1
      %p106 = por %p104, %p105
      %p107 = scmp.ne.s32.totalorder %s99, %s102
      %p108 = scmp.eq.s32.totalorder %s15, 0
      %p109 = por %p107, %p108
      %p110 = scmp.ne.s32.totalorder %s99, %s102
      %p111 = scmp.eq.s32.totalorder %s20, 1
      %p112 = por %p110, %p111
      %p113 = scmp.ne.s32.totalorder %s102, %s103
      %p114 = scmp.eq.s32.totalorder %s20, 0
      %p115 = por %p113, %p114
      %p116 = scmp.ne.s32.totalorder %s102, %s103
      %p117 = scmp.eq.s32.totalorder %s21, 1
      %p118 = por %p116, %p117
      %p120 = scmp.ne.s32.totalorder %s103, %s119
      %p121 = scmp.eq.s32.totalorder %s21, 0
      %p122 = por %p120, %p121
      %p123 = scmp.le.s32.totalorder 1, %s15
      %p124 = scmp.lt.s32.totalorder %s15, 3
      %p125 = pnand %p123, %p124
      %p126 = pneg %p125
      // Predicated region
      $region9: #{tpu_custom_call.1} parent=5 // pred_check
        _
      $region10: #{tpu_custom_call.1} parent=5 // pred_check_branch
        %128 = sbr.rel (%p125) target = $region12
      $region11: #{tpu_custom_call.1} parent=5 // pred_region
        %s129 = ssub.s32 %s15, 1
        // Predicated region
        $region13: #{tpu_custom_call.1} parent=11 // pred_check
          %p130 = pneg %p55
        $region14: #{tpu_custom_call.1} parent=11 // pred_check_branch
          %132 = sbr.rel (%p130) target = $region16
        $region15: #{tpu_custom_call.1} parent=11 // pred_region
          %134 = vsyncadd [#allocation6], 0
          %s136 = sshll.u32 %s0, 4
          %s137 = int_to_ptr.hbm [resolvable:$true] %s136
          %139 = dma.hbm_to_smem %s137, 16, [#allocation3], [#allocation6]
        $region16: #{tpu_custom_call.1} parent=11 // pred_fallthru
          _
      $region12: #{tpu_custom_call.1} parent=5 // pred_fallthru
        _
      %p140 = scmp.lt.s32.totalorder %s15, 2
      // Predicated region
      $region17: #{tpu_custom_call.1} parent=5 // pred_check
        %p141 = pneg %p140
      $region18: #{tpu_custom_call.1} parent=5 // pred_check_branch
        %143 = sbr.rel (%p141) target = $region20
      $region19: #{tpu_custom_call.1} parent=5 // pred_region
        // Predicated region
        $region21: #{tpu_custom_call.1} parent=19 // pred_check
          %p144 = pneg %p79
        $region22: #{tpu_custom_call.1} parent=19 // pred_check_branch
          %146 = sbr.rel (%p144) target = $region24
        $region23: #{tpu_custom_call.1} parent=19 // pred_region
          #allocation10 [shape = 'u32[6]{0}', space=smem, size = 0x18, scoped, tag = 'DMA stride descriptor']
          %s147 = sand.u32 %s69, 1
          %s148 = scalar_lea.sflag [#allocation4], %s147
          %s149 = sand.u32 %s69, 1
          %s150 = smul.addr %s149, 64
          %s151 = scalar_lea.vmem [#allocation7], %s150
          %s152 = smul.u32 2, %s22
          %s153 = smul.u32 2, %s24
          %155 = vsyncadd %s148, 0
          %s156 = smul.addr %s153, 2
          %s157 = smul.addr %s23, 4
          %s158 = sadd.s32 %s156, %s157
          %s159 = smul.addr %s152, 8
          %s160 = sadd.s32 %s158, %s159
          %s161 = smul.addr %s160, 8
          %s162 = scalar_lea.hbm %s1, %s161
          %s164 = sshll.u32 1, 14
          %s165 = sxor.u32 4294967295, %s164
          %s167 = sld [smem:[#allocation0]]
          %s168 = sadd.s32 2, %s167
          %s170 = sshll.u32 7, 26
          %s171 = sxor.u32 4294967295, %s170
          %s172 = sand.u32 0, %s171
          %s173 = sshll.u32 %s168, 26
          %s174 = sor.u32 %s172, %s173
          %s175 = sshll.u32 %s162, 4
          %s176 = int_to_ptr.hbm [resolvable:$true] %s175
          %s177 = sshll.u32 %s151, 4
          %s178 = int_to_ptr.vmem [resolvable:$true] %s177
          %184 = sst [smem:[#allocation10]] 1024
          %s185 = scalar_lea.smem [#allocation10], 1
          %186 = sst [smem:[%s185]] 512
          %s187 = scalar_lea.smem [#allocation10], 2
          %188 = sst [smem:[%s187]] 2
          %s189 = scalar_lea.smem [#allocation10], 3
          %190 = sst [smem:[%s189]] 256
          %s191 = scalar_lea.smem [#allocation10], 4
          %192 = sst [smem:[%s191]] 256
          %s193 = scalar_lea.smem [#allocation10], 5
          %194 = sst [smem:[%s193]] 16
          %196 = dma.general %s176, 1024, %s178, %s148, [#allocation9], [#allocation10], %s174, 0
        $region24: #{tpu_custom_call.1} parent=19 // pred_fallthru
          _
      $region20: #{tpu_custom_call.1} parent=5 // pred_fallthru
        _
      %p197 = scmp.le.s32.totalorder 1, %s15
      %p198 = scmp.lt.s32.totalorder %s15, 3
      %p199 = pnand %p197, %p198
      %p200 = pneg %p199
      // Predicated region
      $region25: #{tpu_custom_call.1} parent=5 // pred_check
        _
      $region26: #{tpu_custom_call.1} parent=5 // pred_check_branch
        %202 = sbr.rel (%p199) target = $region28
      $region27: #{tpu_custom_call.1} parent=5 // pred_region
        %s203 = ssub.s32 %s15, 1
        // Predicated region
        $region29: #{tpu_custom_call.1} parent=27 // pred_check
          %p204 = pneg %p55
        $region30: #{tpu_custom_call.1} parent=27 // pred_check_branch
          %206 = sbr.rel (%p204) target = $region32
        $region31: #{tpu_custom_call.1} parent=27 // pred_region
          %208 = dma.done [#allocation6], 16
        $region32: #{tpu_custom_call.1} parent=27 // pred_fallthru
          _
        %s209 = sand.u32 %s72, 1
        %s210 = scalar_lea.sflag [#allocation4], %s209
        %s211 = sand.u32 %s72, 1
        %s212 = smul.addr %s211, 64
        %s213 = scalar_lea.vmem [#allocation7], %s212
        // Predicated region
        $region33: #{tpu_custom_call.1} parent=27 // pred_check
          %p214 = pneg %p85
        $region34: #{tpu_custom_call.1} parent=27 // pred_check_branch
          %216 = sbr.rel (%p214) target = $region36
        $region35: #{tpu_custom_call.1} parent=27 // pred_region
          %218 = dma.done %s210, 1024
        $region36: #{tpu_custom_call.1} parent=27 // pred_fallthru
          _
        %219 = sfence
        %p220 = pneg %p55
        %p221 = pneg %p52
        %s222 = sand.u32 %s72, 1
        %s223 = scalar_lea.sflag [#allocation4], %s222
        %s224 = sand.u32 %s72, 1
        %s225 = smul.addr %s224, 64
        %s226 = scalar_lea.vmem [#allocation7], %s225
        %p227 = pneg %p85
        %p228 = pneg %p82
        %p229 = pneg %p115
        %p230 = pneg %p112
        %s231 = sand.u32 %s102, 1
        %s232 = scalar_lea.sflag [#allocation5], %s231
        %s233 = sand.u32 %s102, 1
        %s234 = smul.addr %s233, 128
        %s235 = scalar_lea.vmem [#allocation8], %s234
        %s236 = smul.u32 2, %s25
        %s237 = smul.u32 2, %s27
        %s238 = smul.u32 2, %s25
        %s239 = smul.u32 2, %s26
        %s240 = smul.u32 2, %s27
        %s241 = smul.u32 %s26, 18
        %s242 = sld [smem:[#allocation3 + %s241]]
        %s243 = sadd.s32 %s241, 1
        %s244 = sld [smem:[#allocation3 + %s243]]
        %s245 = sadd.s32 %s241, 2
        %s246 = sld [smem:[#allocation3 + %s245]]
        %s247 = sadd.s32 %s241, 3
        %s248 = sld [smem:[#allocation3 + %s247]]
        %s249 = sadd.s32 %s241, 4
        %s250 = sld [smem:[#allocation3 + %s249]]
        %s251 = sadd.s32 %s241, 5
        %s252 = sld [smem:[#allocation3 + %s251]]
        %s253 = sadd.s32 %s241, 6
        %s254 = sld [smem:[#allocation3 + %s253]]
        %s255 = sadd.s32 %s241, 7
        %s256 = sld [smem:[#allocation3 + %s255]]
        %s257 = sadd.s32 %s241, 8
        %s258 = sld [smem:[#allocation3 + %s257]]
        %s259 = sadd.s32 %s241, 9
        %s260 = sld [smem:[#allocation3 + %s259]]
        %s261 = sadd.s32 %s241, 10
        %s262 = sld [smem:[#allocation3 + %s261]]
        %s263 = sadd.s32 %s241, 11
        %s264 = sld [smem:[#allocation3 + %s263]]
        %s265 = sadd.s32 %s241, 12
        %s266 = sld [smem:[#allocation3 + %s265]]
        %s267 = sadd.s32 %s241, 13
        %s268 = sld [smem:[#allocation3 + %s267]]
        %s269 = sadd.s32 %s241, 14
        %s270 = sld [smem:[#allocation3 + %s269]]
        %s271 = sadd.s32 %s241, 15
        %s272 = sld [smem:[#allocation3 + %s271]]
        %s273 = sadd.s32 %s241, 16
        %s274 = sld [smem:[#allocation3 + %s273]]
        %s275 = sadd.s32 %s241, 17
        %s276 = sld [smem:[#allocation3 + %s275]]
        %v277 = vld [vmem:[%s213] sm:$0xff]
        %v278 = vld [vmem:[%s213 + $0x8] sm:$0xff]
        %v279 = vld [vmem:[%s213 + $0x10] sm:$0xff]
        %v280 = vld [vmem:[%s213 + $0x18] sm:$0xff]
        %285 = vrot.lane.b32.xlu0 %v277, 4
        %v286 = vpop.permute.xlu0 %285
        %287 = vrot.lane.b32.xlu0 %v278, 4
        %v288 = vpop.permute.xlu0 %287
        %289 = vrot.lane.b32.xlu0 %v279, 4
        %v290 = vpop.permute.xlu0 %289
        %291 = vrot.lane.b32.xlu0 %v280, 4
        %v292 = vpop.permute.xlu0 %291
        %vm293 = vcmask 31744
        %v294 = vsel %vm293, %v286, %v288
        %v295 = vsel %vm293, %v290, %v292
        %vm302 = vcmask 1047584
        %303 = vst.msk [vmem:[#allocation2] sm:$0xff] %vm302, %v286
        %304 = vst [vmem:[#allocation2 + $0x8] sm:$0xff] %v294
        %305 = vst.msk [vmem:[#allocation2 + $0x10] sm:$0xff] %vm293, %v288
        %306 = vst.msk [vmem:[#allocation2 + $0x18] sm:$0xff] %vm302, %v290
        %307 = vst [vmem:[#allocation2 + $0x20] sm:$0xff] %v295
        %308 = vst.msk [vmem:[#allocation2 + $0x28] sm:$0xff] %vm293, %v292
        %309 = vst.msk [vmem:[#allocation2] sm:$0xff] %vm293, 0.0
        %310 = vst.msk [vmem:[#allocation2 + $0x18] sm:$0xff] %vm293, 0.0
        %vm311 = vcmask 64544
        %312 = vst.msk [vmem:[#allocation2 + $0x10] sm:$0xff] %vm311, 0.0
        %313 = vst.msk [vmem:[#allocation2 + $0x28] sm:$0xff] %vm311, 0.0
        %s314 = smul.u32 0, 3
        %s315 = smul.addr %s314, 8
        %s316 = scalar_lea.vmem [#allocation2], %s315
        %v317 = vld [vmem:[%s316] sm:$0xff]
        %v318 = vld [vmem:[%s316 + $0x8] sm:$0xff]
        %v319 = vld [vmem:[%s316 + $0x18] sm:$0xff]
        %v320 = vld [vmem:[%s316 + $0x20] sm:$0xff]
        %v321 = vstv %s242
        %v322 = vmul.f32 %v321, %v317
        %v323 = vmul.f32 %v321, %v318
        %v324 = vmul.f32 %v321, %v319
        %v325 = vmul.f32 %v321, %v320
        %v326 = vstv %s260
        %v327 = vmul.f32 %v326, %v317
        %v328 = vmul.f32 %v326, %v318
        %v329 = vmul.f32 %v326, %v319
        %v330 = vmul.f32 %v326, %v320
        %v331 = vld [vmem:[%s316 + $0x10] sm:$0xff]
        %v332 = vld [vmem:[%s316 + $0x28] sm:$0xff]
        %v333 = vstv %s244
        %v334 = vmul.f32 %v333, %v317
        %v335 = vmul.f32 %v333, %v318
        %v336 = vmul.f32 %v333, %v331
        %v337 = vmul.f32 %v333, %v319
        %v338 = vmul.f32 %v333, %v320
        %v339 = vmul.f32 %v333, %v332
        %346 = vrot.lane.b32.xlu0 %v334, 127
        %v347 = vpop.permute.xlu0 %346
        %348 = vrot.lane.b32.xlu0 %v335, 127
        %v349 = vpop.permute.xlu0 %348
        %350 = vrot.lane.b32.xlu0 %v336, 127
        %v351 = vpop.permute.xlu0 %350
        %352 = vrot.lane.b32.xlu0 %v337, 127
        %v353 = vpop.permute.xlu0 %352
        %354 = vrot.lane.b32.xlu0 %v338, 127
        %v355 = vpop.permute.xlu0 %354
        %356 = vrot.lane.b32.xlu0 %v339, 127
        %v357 = vpop.permute.xlu0 %356
        %vm358 = vcmask 1039360
        %v359 = vsel %vm358, %v347, %v349
        %v360 = vsel %vm358, %v349, %v351
        %v361 = vsel %vm358, %v353, %v355
        %v362 = vsel %vm358, %v355, %v357
        %v367 = vadd.f32 %v322, %v359
        %v368 = vadd.f32 %v323, %v360
        %v369 = vadd.f32 %v324, %v361
        %v370 = vadd.f32 %v325, %v362
        %v371 = vstv %s262
        %v372 = vmul.f32 %v371, %v317
        %v373 = vmul.f32 %v371, %v318
        %v374 = vmul.f32 %v371, %v331
        %v375 = vmul.f32 %v371, %v319
        %v376 = vmul.f32 %v371, %v320
        %v377 = vmul.f32 %v371, %v332
        %384 = vrot.lane.b32.xlu0 %v372, 127
        %v385 = vpop.permute.xlu0 %384
        %386 = vrot.lane.b32.xlu0 %v373, 127
        %v387 = vpop.permute.xlu0 %386
        %388 = vrot.lane.b32.xlu0 %v374, 127
        %v389 = vpop.permute.xlu0 %388
        %390 = vrot.lane.b32.xlu0 %v375, 127
        %v391 = vpop.permute.xlu0 %390
        %392 = vrot.lane.b32.xlu0 %v376, 127
        %v393 = vpop.permute.xlu0 %392
        %394 = vrot.lane.b32.xlu0 %v377, 127
        %v395 = vpop.permute.xlu0 %394
        %v396 = vsel %vm358, %v385, %v387
        %v397 = vsel %vm358, %v387, %v389
        %v398 = vsel %vm358, %v391, %v393
        %v399 = vsel %vm358, %v393, %v395
        %v404 = vadd.f32 %v327, %v396
        %v405 = vadd.f32 %v328, %v397
        %v406 = vadd.f32 %v329, %v398
        %v407 = vadd.f32 %v330, %v399
        %v408 = vstv %s246
        %v409 = vmul.f32 %v408, %v317
        %v410 = vmul.f32 %v408, %v318
        %v411 = vmul.f32 %v408, %v331
        %v412 = vmul.f32 %v408, %v319
        %v413 = vmul.f32 %v408, %v320
        %v414 = vmul.f32 %v408, %v332
        %421 = vrot.lane.b32.xlu0 %v409, 126
        %v422 = vpop.permute.xlu0 %421
        %423 = vrot.lane.b32.xlu0 %v410, 126
        %v424 = vpop.permute.xlu0 %423
        %425 = vrot.lane.b32.xlu0 %v411, 126
        %v426 = vpop.permute.xlu0 %425
        %427 = vrot.lane.b32.xlu0 %v412, 126
        %v428 = vpop.permute.xlu0 %427
        %429 = vrot.lane.b32.xlu0 %v413, 126
        %v430 = vpop.permute.xlu0 %429
        %431 = vrot.lane.b32.xlu0 %v414, 126
        %v432 = vpop.permute.xlu0 %431
        %vm433 = vcmask 1031168
        %v434 = vsel %vm433, %v422, %v424
        %v435 = vsel %vm433, %v424, %v426
        %v436 = vsel %vm433, %v428, %v430
        %v437 = vsel %vm433, %v430, %v432
        %v442 = vadd.f32 %v367, %v434
        %v443 = vadd.f32 %v368, %v435
        %v444 = vadd.f32 %v369, %v436
        %v445 = vadd.f32 %v370, %v437
        %v446 = vstv %s264
        %v447 = vmul.f32 %v446, %v317
        %v448 = vmul.f32 %v446, %v318
        %v449 = vmul.f32 %v446, %v331
        %v450 = vmul.f32 %v446, %v319
        %v451 = vmul.f32 %v446, %v320
        %v452 = vmul.f32 %v446, %v332
        %459 = vrot.lane.b32.xlu0 %v447, 126
        %v460 = vpop.permute.xlu0 %459
        %461 = vrot.lane.b32.xlu0 %v448, 126
        %v462 = vpop.permute.xlu0 %461
        %463 = vrot.lane.b32.xlu0 %v449, 126
        %v464 = vpop.permute.xlu0 %463
        %465 = vrot.lane.b32.xlu0 %v450, 126
        %v466 = vpop.permute.xlu0 %465
        %467 = vrot.lane.b32.xlu0 %v451, 126
        %v468 = vpop.permute.xlu0 %467
        %469 = vrot.lane.b32.xlu0 %v452, 126
        %v470 = vpop.permute.xlu0 %469
        %v471 = vsel %vm433, %v460, %v462
        %v472 = vsel %vm433, %v462, %v464
        %v473 = vsel %vm433, %v466, %v468
        %v474 = vsel %vm433, %v468, %v470
        %v479 = vadd.f32 %v404, %v471
        %v480 = vadd.f32 %v405, %v472
        %v481 = vadd.f32 %v406, %v473
        %v482 = vadd.f32 %v407, %v474
        %v483 = vstv %s248
        %v484 = vmul.f32 %v483, %v317
        %v485 = vmul.f32 %v483, %v318
        %v486 = vmul.f32 %v483, %v331
        %v487 = vmul.f32 %v483, %v319
        %v488 = vmul.f32 %v483, %v320
        %v489 = vmul.f32 %v483, %v332
        %496 = vrot.lane.b32.xlu0 %v484, 125
        %v497 = vpop.permute.xlu0 %496
        %498 = vrot.lane.b32.xlu0 %v485, 125
        %v499 = vpop.permute.xlu0 %498
        %500 = vrot.lane.b32.xlu0 %v486, 125
        %v501 = vpop.permute.xlu0 %500
        %502 = vrot.lane.b32.xlu0 %v487, 125
        %v503 = vpop.permute.xlu0 %502
        %504 = vrot.lane.b32.xlu0 %v488, 125
        %v505 = vpop.permute.xlu0 %504
        %506 = vrot.lane.b32.xlu0 %v489, 125
        %v507 = vpop.permute.xlu0 %506
        %vm508 = vcmask 1022976
        %v509 = vsel %vm508, %v497, %v499
        %v510 = vsel %vm508, %v499, %v501
        %v511 = vsel %vm508, %v503, %v505
        %v512 = vsel %vm508, %v505, %v507
        %v517 = vadd.f32 %v442, %v509
        %v518 = vadd.f32 %v443, %v510
        %v519 = vadd.f32 %v444, %v511
        %v520 = vadd.f32 %v445, %v512
        %v521 = vstv %s266
        %v522 = vmul.f32 %v521, %v317
        %v523 = vmul.f32 %v521, %v318
        %v524 = vmul.f32 %v521, %v331
        %v525 = vmul.f32 %v521, %v319
        %v526 = vmul.f32 %v521, %v320
        %v527 = vmul.f32 %v521, %v332
        %534 = vrot.lane.b32.xlu0 %v522, 125
        %v535 = vpop.permute.xlu0 %534
        %536 = vrot.lane.b32.xlu0 %v523, 125
        %v537 = vpop.permute.xlu0 %536
        %538 = vrot.lane.b32.xlu0 %v524, 125
        %v539 = vpop.permute.xlu0 %538
        %540 = vrot.lane.b32.xlu0 %v525, 125
        %v541 = vpop.permute.xlu0 %540
        %542 = vrot.lane.b32.xlu0 %v526, 125
        %v543 = vpop.permute.xlu0 %542
        %544 = vrot.lane.b32.xlu0 %v527, 125
        %v545 = vpop.permute.xlu0 %544
        %v546 = vsel %vm508, %v535, %v537
        %v547 = vsel %vm508, %v537, %v539
        %v548 = vsel %vm508, %v541, %v543
        %v549 = vsel %vm508, %v543, %v545
        %v554 = vadd.f32 %v479, %v546
        %v555 = vadd.f32 %v480, %v547
        %v556 = vadd.f32 %v481, %v548
        %v557 = vadd.f32 %v482, %v549
        %v558 = vstv %s250
        %v559 = vmul.f32 %v558, %v317
        %v560 = vmul.f32 %v558, %v318
        %v561 = vmul.f32 %v558, %v331
        %v562 = vmul.f32 %v558, %v319
        %v563 = vmul.f32 %v558, %v320
        %v564 = vmul.f32 %v558, %v332
        %571 = vrot.lane.b32.xlu0 %v559, 124
        %v572 = vpop.permute.xlu0 %571
        %573 = vrot.lane.b32.xlu0 %v560, 124
        %v574 = vpop.permute.xlu0 %573
        %575 = vrot.lane.b32.xlu0 %v561, 124
        %v576 = vpop.permute.xlu0 %575
        %577 = vrot.lane.b32.xlu0 %v562, 124
        %v578 = vpop.permute.xlu0 %577
        %579 = vrot.lane.b32.xlu0 %v563, 124
        %v580 = vpop.permute.xlu0 %579
        %581 = vrot.lane.b32.xlu0 %v564, 124
        %v582 = vpop.permute.xlu0 %581
        %vm583 = vcmask 1014784
        %v584 = vsel %vm583, %v572, %v574
        %v585 = vsel %vm583, %v574, %v576
        %v586 = vsel %vm583, %v578, %v580
        %v587 = vsel %vm583, %v580, %v582
        %v592 = vadd.f32 %v517, %v584
        %v593 = vadd.f32 %v518, %v585
        %v594 = vadd.f32 %v519, %v586
        %v595 = vadd.f32 %v520, %v587
        %v596 = vstv %s268
        %v597 = vmul.f32 %v596, %v317
        %v598 = vmul.f32 %v596, %v318
        %v599 = vmul.f32 %v596, %v331
        %v600 = vmul.f32 %v596, %v319
        %v601 = vmul.f32 %v596, %v320
        %v602 = vmul.f32 %v596, %v332
        %609 = vrot.lane.b32.xlu0 %v597, 124
        %v610 = vpop.permute.xlu0 %609
        %611 = vrot.lane.b32.xlu0 %v598, 124
        %v612 = vpop.permute.xlu0 %611
        %613 = vrot.lane.b32.xlu0 %v599, 124
        %v614 = vpop.permute.xlu0 %613
        %615 = vrot.lane.b32.xlu0 %v600, 124
        %v616 = vpop.permute.xlu0 %615
        %617 = vrot.lane.b32.xlu0 %v601, 124
        %v618 = vpop.permute.xlu0 %617
        %619 = vrot.lane.b32.xlu0 %v602, 124
        %v620 = vpop.permute.xlu0 %619
        %v621 = vsel %vm583, %v610, %v612
        %v622 = vsel %vm583, %v612, %v614
        %v623 = vsel %vm583, %v616, %v618
        %v624 = vsel %vm583, %v618, %v620
        %v629 = vadd.f32 %v554, %v621
        %v630 = vadd.f32 %v555, %v622
        %v631 = vadd.f32 %v556, %v623
        %v632 = vadd.f32 %v557, %v624
        %v633 = vstv %s252
        %v634 = vmul.f32 %v633, %v317
        %v635 = vmul.f32 %v633, %v318
        %v636 = vmul.f32 %v633, %v331
        %v637 = vmul.f32 %v633, %v319
        %v638 = vmul.f32 %v633, %v320
        %v639 = vmul.f32 %v633, %v332
        %646 = vrot.lane.b32.xlu0 %v634, 123
        %v647 = vpop.permute.xlu0 %646
        %648 = vrot.lane.b32.xlu0 %v635, 123
        %v649 = vpop.permute.xlu0 %648
        %650 = vrot.lane.b32.xlu0 %v636, 123
        %v651 = vpop.permute.xlu0 %650
        %652 = vrot.lane.b32.xlu0 %v637, 123
        %v653 = vpop.permute.xlu0 %652
        %654 = vrot.lane.b32.xlu0 %v638, 123
        %v655 = vpop.permute.xlu0 %654
        %656 = vrot.lane.b32.xlu0 %v639, 123
        %v657 = vpop.permute.xlu0 %656
        %vm658 = vcmask 1006592
        %v659 = vsel %vm658, %v647, %v649
        %v660 = vsel %vm658, %v649, %v651
        %v661 = vsel %vm658, %v653, %v655
        %v662 = vsel %vm658, %v655, %v657
        %v667 = vadd.f32 %v592, %v659
        %v668 = vadd.f32 %v593, %v660
        %v669 = vadd.f32 %v594, %v661
        %v670 = vadd.f32 %v595, %v662
        %v671 = vstv %s270
        %v672 = vmul.f32 %v671, %v317
        %v673 = vmul.f32 %v671, %v318
        %v674 = vmul.f32 %v671, %v331
        %v675 = vmul.f32 %v671, %v319
        %v676 = vmul.f32 %v671, %v320
        %v677 = vmul.f32 %v671, %v332
        %684 = vrot.lane.b32.xlu0 %v672, 123
        %v685 = vpop.permute.xlu0 %684
        %686 = vrot.lane.b32.xlu0 %v673, 123
        %v687 = vpop.permute.xlu0 %686
        %688 = vrot.lane.b32.xlu0 %v674, 123
        %v689 = vpop.permute.xlu0 %688
        %690 = vrot.lane.b32.xlu0 %v675, 123
        %v691 = vpop.permute.xlu0 %690
        %692 = vrot.lane.b32.xlu0 %v676, 123
        %v693 = vpop.permute.xlu0 %692
        %694 = vrot.lane.b32.xlu0 %v677, 123
        %v695 = vpop.permute.xlu0 %694
        %v696 = vsel %vm658, %v685, %v687
        %v697 = vsel %vm658, %v687, %v689
        %v698 = vsel %vm658, %v691, %v693
        %v699 = vsel %vm658, %v693, %v695
        %v704 = vadd.f32 %v629, %v696
        %v705 = vadd.f32 %v630, %v697
        %v706 = vadd.f32 %v631, %v698
        %v707 = vadd.f32 %v632, %v699
        %v708 = vstv %s254
        %v709 = vmul.f32 %v708, %v317
        %v710 = vmul.f32 %v708, %v318
        %v711 = vmul.f32 %v708, %v331
        %v712 = vmul.f32 %v708, %v319
        %v713 = vmul.f32 %v708, %v320
        %v714 = vmul.f32 %v708, %v332
        %721 = vrot.lane.b32.xlu0 %v709, 122
        %v722 = vpop.permute.xlu0 %721
        %723 = vrot.lane.b32.xlu0 %v710, 122
        %v724 = vpop.permute.xlu0 %723
        %725 = vrot.lane.b32.xlu0 %v711, 122
        %v726 = vpop.permute.xlu0 %725
        %727 = vrot.lane.b32.xlu0 %v712, 122
        %v728 = vpop.permute.xlu0 %727
        %729 = vrot.lane.b32.xlu0 %v713, 122
        %v730 = vpop.permute.xlu0 %729
        %731 = vrot.lane.b32.xlu0 %v714, 122
        %v732 = vpop.permute.xlu0 %731
        %vm733 = vcmask 998400
        %v734 = vsel %vm733, %v722, %v724
        %v735 = vsel %vm733, %v724, %v726
        %v736 = vsel %vm733, %v728, %v730
        %v737 = vsel %vm733, %v730, %v732
        %v742 = vadd.f32 %v667, %v734
        %v743 = vadd.f32 %v668, %v735
        %v744 = vadd.f32 %v669, %v736
        %v745 = vadd.f32 %v670, %v737
        %v746 = vstv %s272
        %v747 = vmul.f32 %v746, %v317
        %v748 = vmul.f32 %v746, %v318
        %v749 = vmul.f32 %v746, %v331
        %v750 = vmul.f32 %v746, %v319
        %v751 = vmul.f32 %v746, %v320
        %v752 = vmul.f32 %v746, %v332
        %759 = vrot.lane.b32.xlu0 %v747, 122
        %v760 = vpop.permute.xlu0 %759
        %761 = vrot.lane.b32.xlu0 %v748, 122
        %v762 = vpop.permute.xlu0 %761
        %763 = vrot.lane.b32.xlu0 %v749, 122
        %v764 = vpop.permute.xlu0 %763
        %765 = vrot.lane.b32.xlu0 %v750, 122
        %v766 = vpop.permute.xlu0 %765
        %767 = vrot.lane.b32.xlu0 %v751, 122
        %v768 = vpop.permute.xlu0 %767
        %769 = vrot.lane.b32.xlu0 %v752, 122
        %v770 = vpop.permute.xlu0 %769
        %v771 = vsel %vm733, %v760, %v762
        %v772 = vsel %vm733, %v762, %v764
        %v773 = vsel %vm733, %v766, %v768
        %v774 = vsel %vm733, %v768, %v770
        %v779 = vadd.f32 %v704, %v771
        %v780 = vadd.f32 %v705, %v772
        %v781 = vadd.f32 %v706, %v773
        %v782 = vadd.f32 %v707, %v774
        %v783 = vstv %s256
        %v784 = vmul.f32 %v783, %v317
        %v785 = vmul.f32 %v783, %v318
        %v786 = vmul.f32 %v783, %v331
        %v787 = vmul.f32 %v783, %v319
        %v788 = vmul.f32 %v783, %v320
        %v789 = vmul.f32 %v783, %v332
        %796 = vrot.lane.b32.xlu0 %v784, 121
        %v797 = vpop.permute.xlu0 %796
        %798 = vrot.lane.b32.xlu0 %v785, 121
        %v799 = vpop.permute.xlu0 %798
        %800 = vrot.lane.b32.xlu0 %v786, 121
        %v801 = vpop.permute.xlu0 %800
        %802 = vrot.lane.b32.xlu0 %v787, 121
        %v803 = vpop.permute.xlu0 %802
        %804 = vrot.lane.b32.xlu0 %v788, 121
        %v805 = vpop.permute.xlu0 %804
        %806 = vrot.lane.b32.xlu0 %v789, 121
        %v807 = vpop.permute.xlu0 %806
        %vm808 = vcmask 990208
        %v809 = vsel %vm808, %v797, %v799
        %v810 = vsel %vm808, %v799, %v801
        %v811 = vsel %vm808, %v803, %v805
        %v812 = vsel %vm808, %v805, %v807
        %v817 = vadd.f32 %v742, %v809
        %v818 = vadd.f32 %v743, %v810
        %v819 = vadd.f32 %v744, %v811
        %v820 = vadd.f32 %v745, %v812
        %v821 = vstv %s274
        %v822 = vmul.f32 %v821, %v317
        %v823 = vmul.f32 %v821, %v318
        %v824 = vmul.f32 %v821, %v331
        %v825 = vmul.f32 %v821, %v319
        %v826 = vmul.f32 %v821, %v320
        %v827 = vmul.f32 %v821, %v332
        %834 = vrot.lane.b32.xlu0 %v822, 121
        %v835 = vpop.permute.xlu0 %834
        %836 = vrot.lane.b32.xlu0 %v823, 121
        %v837 = vpop.permute.xlu0 %836
        %838 = vrot.lane.b32.xlu0 %v824, 121
        %v839 = vpop.permute.xlu0 %838
        %840 = vrot.lane.b32.xlu0 %v825, 121
        %v841 = vpop.permute.xlu0 %840
        %842 = vrot.lane.b32.xlu0 %v826, 121
        %v843 = vpop.permute.xlu0 %842
        %844 = vrot.lane.b32.xlu0 %v827, 121
        %v845 = vpop.permute.xlu0 %844
        %v846 = vsel %vm808, %v835, %v837
        %v847 = vsel %vm808, %v837, %v839
        %v848 = vsel %vm808, %v841, %v843
        %v849 = vsel %vm808, %v843, %v845
        %v854 = vadd.f32 %v779, %v846
        %v855 = vadd.f32 %v780, %v847
        %v856 = vadd.f32 %v781, %v848
        %v857 = vadd.f32 %v782, %v849
        %v858 = vstv %s258
        %v859 = vmul.f32 %v858, %v317
        %v860 = vmul.f32 %v858, %v318
        %v861 = vmul.f32 %v858, %v331
        %v862 = vmul.f32 %v858, %v319
        %v863 = vmul.f32 %v858, %v320
        %v864 = vmul.f32 %v858, %v332
        %871 = vrot.lane.b32.xlu0 %v859, 120
        %v872 = vpop.permute.xlu0 %871
        %873 = vrot.lane.b32.xlu0 %v860, 120
        %v874 = vpop.permute.xlu0 %873
        %875 = vrot.lane.b32.xlu0 %v861, 120
        %v876 = vpop.permute.xlu0 %875
        %877 = vrot.lane.b32.xlu0 %v862, 120
        %v878 = vpop.permute.xlu0 %877
        %879 = vrot.lane.b32.xlu0 %v863, 120
        %v880 = vpop.permute.xlu0 %879
        %881 = vrot.lane.b32.xlu0 %v864, 120
        %v882 = vpop.permute.xlu0 %881
        %vm883 = vcmask 982016
        %v884 = vsel %vm883, %v872, %v874
        %v885 = vsel %vm883, %v874, %v876
        %v886 = vsel %vm883, %v878, %v880
        %v887 = vsel %vm883, %v880, %v882
        %v892 = vadd.f32 %v817, %v884
        %v893 = vadd.f32 %v818, %v885
        %v894 = vadd.f32 %v819, %v886
        %v895 = vadd.f32 %v820, %v887
        %v896 = vstv %s276
        %v897 = vmul.f32 %v896, %v317
        %v898 = vmul.f32 %v896, %v318
        %v899 = vmul.f32 %v896, %v331
        %v900 = vmul.f32 %v896, %v319
        %v901 = vmul.f32 %v896, %v320
        %v902 = vmul.f32 %v896, %v332
        %909 = vrot.lane.b32.xlu0 %v897, 120
        %v910 = vpop.permute.xlu0 %909
        %911 = vrot.lane.b32.xlu0 %v898, 120
        %v912 = vpop.permute.xlu0 %911
        %913 = vrot.lane.b32.xlu0 %v899, 120
        %v914 = vpop.permute.xlu0 %913
        %915 = vrot.lane.b32.xlu0 %v900, 120
        %v916 = vpop.permute.xlu0 %915
        %917 = vrot.lane.b32.xlu0 %v901, 120
        %v918 = vpop.permute.xlu0 %917
        %919 = vrot.lane.b32.xlu0 %v902, 120
        %v920 = vpop.permute.xlu0 %919
        %v921 = vsel %vm883, %v910, %v912
        %v922 = vsel %vm883, %v912, %v914
        %v923 = vsel %vm883, %v916, %v918
        %v924 = vsel %vm883, %v918, %v920
        %v929 = vadd.f32 %v854, %v921
        %v930 = vadd.f32 %v855, %v922
        %v931 = vadd.f32 %v856, %v923
        %v932 = vadd.f32 %v857, %v924
        %s933 = smul.u32 0, 2
        %s934 = smul.addr %s933, 8
        %s935 = scalar_lea.vmem %s235, %s934 [#allocation8]
        %936 = vst [vmem:[%s935] sm:$0xff] %v892
        %937 = vst [vmem:[%s935 + $0x8] sm:$0xff] %v893
        %938 = vst [vmem:[%s935 + $0x10] sm:$0xff] %v894
        %939 = vst [vmem:[%s935 + $0x18] sm:$0xff] %v895
        %s940 = sadd.s32 %s933, 4
        %s941 = smul.addr %s940, 8
        %s942 = scalar_lea.vmem %s235, %s941 [#allocation8]
        %943 = vst [vmem:[%s942] sm:$0xff] %v929
        %944 = vst [vmem:[%s942 + $0x8] sm:$0xff] %v930
        %945 = vst [vmem:[%s942 + $0x10] sm:$0xff] %v931
        %946 = vst [vmem:[%s942 + $0x18] sm:$0xff] %v932
        %s947 = scalar_lea.vmem %s213, 32 [#allocation7]
        %v948 = vld [vmem:[%s947] sm:$0xff]
        %v949 = vld [vmem:[%s947 + $0x8] sm:$0xff]
        %v950 = vld [vmem:[%s947 + $0x10] sm:$0xff]
        %v951 = vld [vmem:[%s947 + $0x18] sm:$0xff]
        %956 = vrot.lane.b32.xlu0 %v948, 4
        %v957 = vpop.permute.xlu0 %956
        %958 = vrot.lane.b32.xlu0 %v949, 4
        %v959 = vpop.permute.xlu0 %958
        %960 = vrot.lane.b32.xlu0 %v950, 4
        %v961 = vpop.permute.xlu0 %960
        %962 = vrot.lane.b32.xlu0 %v951, 4
        %v963 = vpop.permute.xlu0 %962
        %v964 = vsel %vm293, %v957, %v959
        %v965 = vsel %vm293, %v961, %v963
        %972 = vst.msk [vmem:[#allocation2] sm:$0xff] %vm302, %v957
        %973 = vst [vmem:[#allocation2 + $0x8] sm:$0xff] %v964
        %974 = vst.msk [vmem:[#allocation2 + $0x10] sm:$0xff] %vm293, %v959
        %975 = vst.msk [vmem:[#allocation2 + $0x18] sm:$0xff] %vm302, %v961
        %976 = vst [vmem:[#allocation2 + $0x20] sm:$0xff] %v965
        %977 = vst.msk [vmem:[#allocation2 + $0x28] sm:$0xff] %vm293, %v963
        %978 = vst.msk [vmem:[#allocation2] sm:$0xff] %vm293, 0.0
        %979 = vst.msk [vmem:[#allocation2 + $0x18] sm:$0xff] %vm293, 0.0
        %980 = vst.msk [vmem:[#allocation2 + $0x10] sm:$0xff] %vm311, 0.0
        %981 = vst.msk [vmem:[#allocation2 + $0x28] sm:$0xff] %vm311, 0.0
        %v982 = vld [vmem:[%s316] sm:$0xff]
        %v983 = vld [vmem:[%s316 + $0x8] sm:$0xff]
        %v984 = vld [vmem:[%s316 + $0x18] sm:$0xff]
        %v985 = vld [vmem:[%s316 + $0x20] sm:$0xff]
        %v986 = vmul.f32 %v321, %v982
        %v987 = vmul.f32 %v321, %v983
        %v988 = vmul.f32 %v321, %v984
        %v989 = vmul.f32 %v321, %v985
        %v990 = vmul.f32 %v326, %v982
        %v991 = vmul.f32 %v326, %v983
        %v992 = vmul.f32 %v326, %v984
        %v993 = vmul.f32 %v326, %v985
        %v994 = vld [vmem:[%s316 + $0x10] sm:$0xff]
        %v995 = vld [vmem:[%s316 + $0x28] sm:$0xff]
        %v996 = vmul.f32 %v333, %v982
        %v997 = vmul.f32 %v333, %v983
        %v998 = vmul.f32 %v333, %v994
        %v999 = vmul.f32 %v333, %v984
        %v1000 = vmul.f32 %v333, %v985
        %v1001 = vmul.f32 %v333, %v995
        %1008 = vrot.lane.b32.xlu0 %v996, 127
        %v1009 = vpop.permute.xlu0 %1008
        %1010 = vrot.lane.b32.xlu0 %v997, 127
        %v1011 = vpop.permute.xlu0 %1010
        %1012 = vrot.lane.b32.xlu0 %v998, 127
        %v1013 = vpop.permute.xlu0 %1012
        %1014 = vrot.lane.b32.xlu0 %v999, 127
        %v1015 = vpop.permute.xlu0 %1014
        %1016 = vrot.lane.b32.xlu0 %v1000, 127
        %v1017 = vpop.permute.xlu0 %1016
        %1018 = vrot.lane.b32.xlu0 %v1001, 127
        %v1019 = vpop.permute.xlu0 %1018
        %v1020 = vsel %vm358, %v1009, %v1011
        %v1021 = vsel %vm358, %v1011, %v1013
        %v1022 = vsel %vm358, %v1015, %v1017
        %v1023 = vsel %vm358, %v1017, %v1019
        %v1028 = vadd.f32 %v986, %v1020
        %v1029 = vadd.f32 %v987, %v1021
        %v1030 = vadd.f32 %v988, %v1022
        %v1031 = vadd.f32 %v989, %v1023
        %v1032 = vmul.f32 %v371, %v982
        %v1033 = vmul.f32 %v371, %v983
        %v1034 = vmul.f32 %v371, %v994
        %v1035 = vmul.f32 %v371, %v984
        %v1036 = vmul.f32 %v371, %v985
        %v1037 = vmul.f32 %v371, %v995
        %1044 = vrot.lane.b32.xlu0 %v1032, 127
        %v1045 = vpop.permute.xlu0 %1044
        %1046 = vrot.lane.b32.xlu0 %v1033, 127
        %v1047 = vpop.permute.xlu0 %1046
        %1048 = vrot.lane.b32.xlu0 %v1034, 127
        %v1049 = vpop.permute.xlu0 %1048
        %1050 = vrot.lane.b32.xlu0 %v1035, 127
        %v1051 = vpop.permute.xlu0 %1050
        %1052 = vrot.lane.b32.xlu0 %v1036, 127
        %v1053 = vpop.permute.xlu0 %1052
        %1054 = vrot.lane.b32.xlu0 %v1037, 127
        %v1055 = vpop.permute.xlu0 %1054
        %v1056 = vsel %vm358, %v1045, %v1047
        %v1057 = vsel %vm358, %v1047, %v1049
        %v1058 = vsel %vm358, %v1051, %v1053
        %v1059 = vsel %vm358, %v1053, %v1055
        %v1064 = vadd.f32 %v990, %v1056
        %v1065 = vadd.f32 %v991, %v1057
        %v1066 = vadd.f32 %v992, %v1058
        %v1067 = vadd.f32 %v993, %v1059
        %v1068 = vmul.f32 %v408, %v982
        %v1069 = vmul.f32 %v408, %v983
        %v1070 = vmul.f32 %v408, %v994
        %v1071 = vmul.f32 %v408, %v984
        %v1072 = vmul.f32 %v408, %v985
        %v1073 = vmul.f32 %v408, %v995
        %1080 = vrot.lane.b32.xlu0 %v1068, 126
        %v1081 = vpop.permute.xlu0 %1080
        %1082 = vrot.lane.b32.xlu0 %v1069, 126
        %v1083 = vpop.permute.xlu0 %1082
        %1084 = vrot.lane.b32.xlu0 %v1070, 126
        %v1085 = vpop.permute.xlu0 %1084
        %1086 = vrot.lane.b32.xlu0 %v1071, 126
        %v1087 = vpop.permute.xlu0 %1086
        %1088 = vrot.lane.b32.xlu0 %v1072, 126
        %v1089 = vpop.permute.xlu0 %1088
        %1090 = vrot.lane.b32.xlu0 %v1073, 126
        %v1091 = vpop.permute.xlu0 %1090
        %v1092 = vsel %vm433, %v1081, %v1083
        %v1093 = vsel %vm433, %v1083, %v1085
        %v1094 = vsel %vm433, %v1087, %v1089
        %v1095 = vsel %vm433, %v1089, %v1091
        %v1100 = vadd.f32 %v1028, %v1092
        %v1101 = vadd.f32 %v1029, %v1093
        %v1102 = vadd.f32 %v1030, %v1094
        %v1103 = vadd.f32 %v1031, %v1095
        %v1104 = vmul.f32 %v446, %v982
        %v1105 = vmul.f32 %v446, %v983
        %v1106 = vmul.f32 %v446, %v994
        %v1107 = vmul.f32 %v446, %v984
        %v1108 = vmul.f32 %v446, %v985
        %v1109 = vmul.f32 %v446, %v995
        %1116 = vrot.lane.b32.xlu0 %v1104, 126
        %v1117 = vpop.permute.xlu0 %1116
        %1118 = vrot.lane.b32.xlu0 %v1105, 126
        %v1119 = vpop.permute.xlu0 %1118
        %1120 = vrot.lane.b32.xlu0 %v1106, 126
        %v1121 = vpop.permute.xlu0 %1120
        %1122 = vrot.lane.b32.xlu0 %v1107, 126
        %v1123 = vpop.permute.xlu0 %1122
        %1124 = vrot.lane.b32.xlu0 %v1108, 126
        %v1125 = vpop.permute.xlu0 %1124
        %1126 = vrot.lane.b32.xlu0 %v1109, 126
        %v1127 = vpop.permute.xlu0 %1126
        %v1128 = vsel %vm433, %v1117, %v1119
        %v1129 = vsel %vm433, %v1119, %v1121
        %v1130 = vsel %vm433, %v1123, %v1125
        %v1131 = vsel %vm433, %v1125, %v1127
        %v1136 = vadd.f32 %v1064, %v1128
        %v1137 = vadd.f32 %v1065, %v1129
        %v1138 = vadd.f32 %v1066, %v1130
        %v1139 = vadd.f32 %v1067, %v1131
        %v1140 = vmul.f32 %v483, %v982
        %v1141 = vmul.f32 %v483, %v983
        %v1142 = vmul.f32 %v483, %v994
        %v1143 = vmul.f32 %v483, %v984
        %v1144 = vmul.f32 %v483, %v985
        %v1145 = vmul.f32 %v483, %v995
        %1152 = vrot.lane.b32.xlu0 %v1140, 125
        %v1153 = vpop.permute.xlu0 %1152
        %1154 = vrot.lane.b32.xlu0 %v1141, 125
        %v1155 = vpop.permute.xlu0 %1154
        %1156 = vrot.lane.b32.xlu0 %v1142, 125
        %v1157 = vpop.permute.xlu0 %1156
        %1158 = vrot.lane.b32.xlu0 %v1143, 125
        %v1159 = vpop.permute.xlu0 %1158
        %1160 = vrot.lane.b32.xlu0 %v1144, 125
        %v1161 = vpop.permute.xlu0 %1160
        %1162 = vrot.lane.b32.xlu0 %v1145, 125
        %v1163 = vpop.permute.xlu0 %1162
        %v1164 = vsel %vm508, %v1153, %v1155
        %v1165 = vsel %vm508, %v1155, %v1157
        %v1166 = vsel %vm508, %v1159, %v1161
        %v1167 = vsel %vm508, %v1161, %v1163
        %v1172 = vadd.f32 %v1100, %v1164
        %v1173 = vadd.f32 %v1101, %v1165
        %v1174 = vadd.f32 %v1102, %v1166
        %v1175 = vadd.f32 %v1103, %v1167
        %v1176 = vmul.f32 %v521, %v982
        %v1177 = vmul.f32 %v521, %v983
        %v1178 = vmul.f32 %v521, %v994
        %v1179 = vmul.f32 %v521, %v984
        %v1180 = vmul.f32 %v521, %v985
        %v1181 = vmul.f32 %v521, %v995
        %1188 = vrot.lane.b32.xlu0 %v1176, 125
        %v1189 = vpop.permute.xlu0 %1188
        %1190 = vrot.lane.b32.xlu0 %v1177, 125
        %v1191 = vpop.permute.xlu0 %1190
        %1192 = vrot.lane.b32.xlu0 %v1178, 125
        %v1193 = vpop.permute.xlu0 %1192
        %1194 = vrot.lane.b32.xlu0 %v1179, 125
        %v1195 = vpop.permute.xlu0 %1194
        %1196 = vrot.lane.b32.xlu0 %v1180, 125
        %v1197 = vpop.permute.xlu0 %1196
        %1198 = vrot.lane.b32.xlu0 %v1181, 125
        %v1199 = vpop.permute.xlu0 %1198
        %v1200 = vsel %vm508, %v1189, %v1191
        %v1201 = vsel %vm508, %v1191, %v1193
        %v1202 = vsel %vm508, %v1195, %v1197
        %v1203 = vsel %vm508, %v1197, %v1199
        %v1208 = vadd.f32 %v1136, %v1200
        %v1209 = vadd.f32 %v1137, %v1201
        %v1210 = vadd.f32 %v1138, %v1202
        %v1211 = vadd.f32 %v1139, %v1203
        %v1212 = vmul.f32 %v558, %v982
        %v1213 = vmul.f32 %v558, %v983
        %v1214 = vmul.f32 %v558, %v994
        %v1215 = vmul.f32 %v558, %v984
        %v1216 = vmul.f32 %v558, %v985
        %v1217 = vmul.f32 %v558, %v995
        %1224 = vrot.lane.b32.xlu0 %v1212, 124
        %v1225 = vpop.permute.xlu0 %1224
        %1226 = vrot.lane.b32.xlu0 %v1213, 124
        %v1227 = vpop.permute.xlu0 %1226
        %1228 = vrot.lane.b32.xlu0 %v1214, 124
        %v1229 = vpop.permute.xlu0 %1228
        %1230 = vrot.lane.b32.xlu0 %v1215, 124
        %v1231 = vpop.permute.xlu0 %1230
        %1232 = vrot.lane.b32.xlu0 %v1216, 124
        %v1233 = vpop.permute.xlu0 %1232
        %1234 = vrot.lane.b32.xlu0 %v1217, 124
        %v1235 = vpop.permute.xlu0 %1234
        %v1236 = vsel %vm583, %v1225, %v1227
        %v1237 = vsel %vm583, %v1227, %v1229
        %v1238 = vsel %vm583, %v1231, %v1233
        %v1239 = vsel %vm583, %v1233, %v1235
        %v1244 = vadd.f32 %v1172, %v1236
        %v1245 = vadd.f32 %v1173, %v1237
        %v1246 = vadd.f32 %v1174, %v1238
        %v1247 = vadd.f32 %v1175, %v1239
        %v1248 = vmul.f32 %v596, %v982
        %v1249 = vmul.f32 %v596, %v983
        %v1250 = vmul.f32 %v596, %v994
        %v1251 = vmul.f32 %v596, %v984
        %v1252 = vmul.f32 %v596, %v985
        %v1253 = vmul.f32 %v596, %v995
        %1260 = vrot.lane.b32.xlu0 %v1248, 124
        %v1261 = vpop.permute.xlu0 %1260
        %1262 = vrot.lane.b32.xlu0 %v1249, 124
        %v1263 = vpop.permute.xlu0 %1262
        %1264 = vrot.lane.b32.xlu0 %v1250, 124
        %v1265 = vpop.permute.xlu0 %1264
        %1266 = vrot.lane.b32.xlu0 %v1251, 124
        %v1267 = vpop.permute.xlu0 %1266
        %1268 = vrot.lane.b32.xlu0 %v1252, 124
        %v1269 = vpop.permute.xlu0 %1268
        %1270 = vrot.lane.b32.xlu0 %v1253, 124
        %v1271 = vpop.permute.xlu0 %1270
        %v1272 = vsel %vm583, %v1261, %v1263
        %v1273 = vsel %vm583, %v1263, %v1265
        %v1274 = vsel %vm583, %v1267, %v1269
        %v1275 = vsel %vm583, %v1269, %v1271
        %v1280 = vadd.f32 %v1208, %v1272
        %v1281 = vadd.f32 %v1209, %v1273
        %v1282 = vadd.f32 %v1210, %v1274
        %v1283 = vadd.f32 %v1211, %v1275
        %v1284 = vmul.f32 %v633, %v982
        %v1285 = vmul.f32 %v633, %v983
        %v1286 = vmul.f32 %v633, %v994
        %v1287 = vmul.f32 %v633, %v984
        %v1288 = vmul.f32 %v633, %v985
        %v1289 = vmul.f32 %v633, %v995
        %1296 = vrot.lane.b32.xlu0 %v1284, 123
        %v1297 = vpop.permute.xlu0 %1296
        %1298 = vrot.lane.b32.xlu0 %v1285, 123
        %v1299 = vpop.permute.xlu0 %1298
        %1300 = vrot.lane.b32.xlu0 %v1286, 123
        %v1301 = vpop.permute.xlu0 %1300
        %1302 = vrot.lane.b32.xlu0 %v1287, 123
        %v1303 = vpop.permute.xlu0 %1302
        %1304 = vrot.lane.b32.xlu0 %v1288, 123
        %v1305 = vpop.permute.xlu0 %1304
        %1306 = vrot.lane.b32.xlu0 %v1289, 123
        %v1307 = vpop.permute.xlu0 %1306
        %v1308 = vsel %vm658, %v1297, %v1299
        %v1309 = vsel %vm658, %v1299, %v1301
        %v1310 = vsel %vm658, %v1303, %v1305
        %v1311 = vsel %vm658, %v1305, %v1307
        %v1316 = vadd.f32 %v1244, %v1308
        %v1317 = vadd.f32 %v1245, %v1309
        %v1318 = vadd.f32 %v1246, %v1310
        %v1319 = vadd.f32 %v1247, %v1311
        %v1320 = vmul.f32 %v671, %v982
        %v1321 = vmul.f32 %v671, %v983
        %v1322 = vmul.f32 %v671, %v994
        %v1323 = vmul.f32 %v671, %v984
        %v1324 = vmul.f32 %v671, %v985
        %v1325 = vmul.f32 %v671, %v995
        %1332 = vrot.lane.b32.xlu0 %v1320, 123
        %v1333 = vpop.permute.xlu0 %1332
        %1334 = vrot.lane.b32.xlu0 %v1321, 123
        %v1335 = vpop.permute.xlu0 %1334
        %1336 = vrot.lane.b32.xlu0 %v1322, 123
        %v1337 = vpop.permute.xlu0 %1336
        %1338 = vrot.lane.b32.xlu0 %v1323, 123
        %v1339 = vpop.permute.xlu0 %1338
        %1340 = vrot.lane.b32.xlu0 %v1324, 123
        %v1341 = vpop.permute.xlu0 %1340
        %1342 = vrot.lane.b32.xlu0 %v1325, 123
        %v1343 = vpop.permute.xlu0 %1342
        %v1344 = vsel %vm658, %v1333, %v1335
        %v1345 = vsel %vm658, %v1335, %v1337
        %v1346 = vsel %vm658, %v1339, %v1341
        %v1347 = vsel %vm658, %v1341, %v1343
        %v1352 = vadd.f32 %v1280, %v1344
        %v1353 = vadd.f32 %v1281, %v1345
        %v1354 = vadd.f32 %v1282, %v1346
        %v1355 = vadd.f32 %v1283, %v1347
        %v1356 = vmul.f32 %v708, %v982
        %v1357 = vmul.f32 %v708, %v983
        %v1358 = vmul.f32 %v708, %v994
        %v1359 = vmul.f32 %v708, %v984
        %v1360 = vmul.f32 %v708, %v985
        %v1361 = vmul.f32 %v708, %v995
        %1368 = vrot.lane.b32.xlu0 %v1356, 122
        %v1369 = vpop.permute.xlu0 %1368
        %1370 = vrot.lane.b32.xlu0 %v1357, 122
        %v1371 = vpop.permute.xlu0 %1370
        %1372 = vrot.lane.b32.xlu0 %v1358, 122
        %v1373 = vpop.permute.xlu0 %1372
        %1374 = vrot.lane.b32.xlu0 %v1359, 122
        %v1375 = vpop.permute.xlu0 %1374
        %1376 = vrot.lane.b32.xlu0 %v1360, 122
        %v1377 = vpop.permute.xlu0 %1376
        %1378 = vrot.lane.b32.xlu0 %v1361, 122
        %v1379 = vpop.permute.xlu0 %1378
        %v1380 = vsel %vm733, %v1369, %v1371
        %v1381 = vsel %vm733, %v1371, %v1373
        %v1382 = vsel %vm733, %v1375, %v1377
        %v1383 = vsel %vm733, %v1377, %v1379
        %v1388 = vadd.f32 %v1316, %v1380
        %v1389 = vadd.f32 %v1317, %v1381
        %v1390 = vadd.f32 %v1318, %v1382
        %v1391 = vadd.f32 %v1319, %v1383
        %v1392 = vmul.f32 %v746, %v982
        %v1393 = vmul.f32 %v746, %v983
        %v1394 = vmul.f32 %v746, %v994
        %v1395 = vmul.f32 %v746, %v984
        %v1396 = vmul.f32 %v746, %v985
        %v1397 = vmul.f32 %v746, %v995
        %1404 = vrot.lane.b32.xlu0 %v1392, 122
        %v1405 = vpop.permute.xlu0 %1404
        %1406 = vrot.lane.b32.xlu0 %v1393, 122
        %v1407 = vpop.permute.xlu0 %1406
        %1408 = vrot.lane.b32.xlu0 %v1394, 122
        %v1409 = vpop.permute.xlu0 %1408
        %1410 = vrot.lane.b32.xlu0 %v1395, 122
        %v1411 = vpop.permute.xlu0 %1410
        %1412 = vrot.lane.b32.xlu0 %v1396, 122
        %v1413 = vpop.permute.xlu0 %1412
        %1414 = vrot.lane.b32.xlu0 %v1397, 122
        %v1415 = vpop.permute.xlu0 %1414
        %v1416 = vsel %vm733, %v1405, %v1407
        %v1417 = vsel %vm733, %v1407, %v1409
        %v1418 = vsel %vm733, %v1411, %v1413
        %v1419 = vsel %vm733, %v1413, %v1415
        %v1424 = vadd.f32 %v1352, %v1416
        %v1425 = vadd.f32 %v1353, %v1417
        %v1426 = vadd.f32 %v1354, %v1418
        %v1427 = vadd.f32 %v1355, %v1419
        %v1428 = vmul.f32 %v783, %v982
        %v1429 = vmul.f32 %v783, %v983
        %v1430 = vmul.f32 %v783, %v994
        %v1431 = vmul.f32 %v783, %v984
        %v1432 = vmul.f32 %v783, %v985
        %v1433 = vmul.f32 %v783, %v995
        %1440 = vrot.lane.b32.xlu0 %v1428, 121
        %v1441 = vpop.permute.xlu0 %1440
        %1442 = vrot.lane.b32.xlu0 %v1429, 121
        %v1443 = vpop.permute.xlu0 %1442
        %1444 = vrot.lane.b32.xlu0 %v1430, 121
        %v1445 = vpop.permute.xlu0 %1444
        %1446 = vrot.lane.b32.xlu0 %v1431, 121
        %v1447 = vpop.permute.xlu0 %1446
        %1448 = vrot.lane.b32.xlu0 %v1432, 121
        %v1449 = vpop.permute.xlu0 %1448
        %1450 = vrot.lane.b32.xlu0 %v1433, 121
        %v1451 = vpop.permute.xlu0 %1450
        %v1452 = vsel %vm808, %v1441, %v1443
        %v1453 = vsel %vm808, %v1443, %v1445
        %v1454 = vsel %vm808, %v1447, %v1449
        %v1455 = vsel %vm808, %v1449, %v1451
        %v1460 = vadd.f32 %v1388, %v1452
        %v1461 = vadd.f32 %v1389, %v1453
        %v1462 = vadd.f32 %v1390, %v1454
        %v1463 = vadd.f32 %v1391, %v1455
        %v1464 = vmul.f32 %v821, %v982
        %v1465 = vmul.f32 %v821, %v983
        %v1466 = vmul.f32 %v821, %v994
        %v1467 = vmul.f32 %v821, %v984
        %v1468 = vmul.f32 %v821, %v985
        %v1469 = vmul.f32 %v821, %v995
        %1476 = vrot.lane.b32.xlu0 %v1464, 121
        %v1477 = vpop.permute.xlu0 %1476
        %1478 = vrot.lane.b32.xlu0 %v1465, 121
        %v1479 = vpop.permute.xlu0 %1478
        %1480 = vrot.lane.b32.xlu0 %v1466, 121
        %v1481 = vpop.permute.xlu0 %1480
        %1482 = vrot.lane.b32.xlu0 %v1467, 121
        %v1483 = vpop.permute.xlu0 %1482
        %1484 = vrot.lane.b32.xlu0 %v1468, 121
        %v1485 = vpop.permute.xlu0 %1484
        %1486 = vrot.lane.b32.xlu0 %v1469, 121
        %v1487 = vpop.permute.xlu0 %1486
        %v1488 = vsel %vm808, %v1477, %v1479
        %v1489 = vsel %vm808, %v1479, %v1481
        %v1490 = vsel %vm808, %v1483, %v1485
        %v1491 = vsel %vm808, %v1485, %v1487
        %v1496 = vadd.f32 %v1424, %v1488
        %v1497 = vadd.f32 %v1425, %v1489
        %v1498 = vadd.f32 %v1426, %v1490
        %v1499 = vadd.f32 %v1427, %v1491
        %v1500 = vmul.f32 %v858, %v982
        %v1501 = vmul.f32 %v858, %v983
        %v1502 = vmul.f32 %v858, %v994
        %v1503 = vmul.f32 %v858, %v984
        %v1504 = vmul.f32 %v858, %v985
        %v1505 = vmul.f32 %v858, %v995
        %1512 = vrot.lane.b32.xlu0 %v1500, 120
        %v1513 = vpop.permute.xlu0 %1512
        %1514 = vrot.lane.b32.xlu0 %v1501, 120
        %v1515 = vpop.permute.xlu0 %1514
        %1516 = vrot.lane.b32.xlu0 %v1502, 120
        %v1517 = vpop.permute.xlu0 %1516
        %1518 = vrot.lane.b32.xlu0 %v1503, 120
        %v1519 = vpop.permute.xlu0 %1518
        %1520 = vrot.lane.b32.xlu0 %v1504, 120
        %v1521 = vpop.permute.xlu0 %1520
        %1522 = vrot.lane.b32.xlu0 %v1505, 120
        %v1523 = vpop.permute.xlu0 %1522
        %v1524 = vsel %vm883, %v1513, %v1515
        %v1525 = vsel %vm883, %v1515, %v1517
        %v1526 = vsel %vm883, %v1519, %v1521
        %v1527 = vsel %vm883, %v1521, %v1523
        %v1532 = vadd.f32 %v1460, %v1524
        %v1533 = vadd.f32 %v1461, %v1525
        %v1534 = vadd.f32 %v1462, %v1526
        %v1535 = vadd.f32 %v1463, %v1527
        %v1536 = vmul.f32 %v896, %v982
        %v1537 = vmul.f32 %v896, %v983
        %v1538 = vmul.f32 %v896, %v994
        %v1539 = vmul.f32 %v896, %v984
        %v1540 = vmul.f32 %v896, %v985
        %v1541 = vmul.f32 %v896, %v995
        %1548 = vrot.lane.b32.xlu0 %v1536, 120
        %v1549 = vpop.permute.xlu0 %1548
        %1550 = vrot.lane.b32.xlu0 %v1537, 120
        %v1551 = vpop.permute.xlu0 %1550
        %1552 = vrot.lane.b32.xlu0 %v1538, 120
        %v1553 = vpop.permute.xlu0 %1552
        %1554 = vrot.lane.b32.xlu0 %v1539, 120
        %v1555 = vpop.permute.xlu0 %1554
        %1556 = vrot.lane.b32.xlu0 %v1540, 120
        %v1557 = vpop.permute.xlu0 %1556
        %1558 = vrot.lane.b32.xlu0 %v1541, 120
        %v1559 = vpop.permute.xlu0 %1558
        %v1560 = vsel %vm883, %v1549, %v1551
        %v1561 = vsel %vm883, %v1551, %v1553
        %v1562 = vsel %vm883, %v1555, %v1557
        %v1563 = vsel %vm883, %v1557, %v1559
        %v1568 = vadd.f32 %v1496, %v1560
        %v1569 = vadd.f32 %v1497, %v1561
        %v1570 = vadd.f32 %v1498, %v1562
        %v1571 = vadd.f32 %v1499, %v1563
        %s1572 = sadd.s32 %s933, 8
        %s1573 = smul.addr %s1572, 8
        %s1574 = scalar_lea.vmem %s235, %s1573 [#allocation8]
        %1575 = vst [vmem:[%s1574] sm:$0xff] %v1532
        %1576 = vst [vmem:[%s1574 + $0x8] sm:$0xff] %v1533
        %1577 = vst [vmem:[%s1574 + $0x10] sm:$0xff] %v1534
        %1578 = vst [vmem:[%s1574 + $0x18] sm:$0xff] %v1535
        %s1579 = sadd.s32 %s940, 8
        %s1580 = smul.addr %s1579, 8
        %s1581 = scalar_lea.vmem %s235, %s1580 [#allocation8]
        %1582 = vst [vmem:[%s1581] sm:$0xff] %v1568
        %1583 = vst [vmem:[%s1581 + $0x8] sm:$0xff] %v1569
        %1584 = vst [vmem:[%s1581 + $0x10] sm:$0xff] %v1570
        %1585 = vst [vmem:[%s1581 + $0x18] sm:$0xff] %v1571
        %s1586 = sand.u32 %s102, 1
        %s1587 = scalar_lea.sflag [#allocation5], %s1586
        %s1588 = sand.u32 %s102, 1
        %s1589 = smul.addr %s1588, 128
        %s1590 = scalar_lea.vmem [#allocation8], %s1589
        // Predicated region
        $region37: #{tpu_custom_call.1} parent=27 // pred_check
          %p1591 = pneg %p112
        $region38: #{tpu_custom_call.1} parent=27 // pred_check_branch
          %1593 = sbr.rel (%p1591) target = $region40
        $region39: #{tpu_custom_call.1} parent=27 // pred_region
          #allocation12 [shape = 'u32[6]{0}', space=smem, size = 0x18, scoped, tag = 'DMA stride descriptor']
          %s1594 = smul.u32 2, %s25
          %s1595 = smul.u32 2, %s26
          %s1596 = smul.u32 2, %s27
          %1598 = vsyncadd %s1587, 0
          %s1599 = smul.addr %s1596, 2
          %s1600 = smul.addr %s1595, 4
          %s1601 = sadd.s32 %s1599, %s1600
          %s1602 = smul.addr %s1594, 16
          %s1603 = sadd.s32 %s1601, %s1602
          %s1604 = smul.addr %s1603, 8
          %s1605 = scalar_lea.hbm %s2, %s1604
          %s1607 = sshll.u32 1, 14
          %s1608 = sxor.u32 4294967295, %s1607
          %s1611 = sshll.u32 7, 18
          %s1612 = sxor.u32 4294967295, %s1611
          %s1613 = sand.u32 0, %s1612
          %s1615 = sor.u32 %s1613, 0
          %s1616 = sshll.u32 %s1590, 4
          %s1617 = int_to_ptr.vmem [resolvable:$true] %s1616
          %s1618 = sshll.u32 %s1605, 4
          %s1619 = int_to_ptr.hbm [resolvable:$true] %s1618
          %1625 = sst [smem:[#allocation12]] 1024
          %s1626 = scalar_lea.smem [#allocation12], 1
          %1627 = sst [smem:[%s1626]] 2048
          %s1628 = scalar_lea.smem [#allocation12], 2
          %1629 = sst [smem:[%s1628]] 4
          %s1630 = scalar_lea.smem [#allocation12], 3
          %1631 = sst [smem:[%s1630]] 256
          %s1632 = scalar_lea.smem [#allocation12], 4
          %1633 = sst [smem:[%s1632]] 256
          %s1634 = scalar_lea.smem [#allocation12], 5
          %1635 = sst [smem:[%s1634]] 16
          %1637 = dma.general %s1617, 2048, %s1619, %s1587, [#allocation11], [#allocation12], %s1615, 0
        $region40: #{tpu_custom_call.1} parent=27 // pred_fallthru
          _
      $region28: #{tpu_custom_call.1} parent=5 // pred_fallthru
        _
      %p1638 = scmp.le.s32.totalorder 2, %s15
      // Predicated region
      $region41: #{tpu_custom_call.1} parent=5 // pred_check
        %p1639 = pneg %p1638
      $region42: #{tpu_custom_call.1} parent=5 // pred_check_branch
        %1641 = sbr.rel (%p1639) target = $region44
      $region43: #{tpu_custom_call.1} parent=5 // pred_region
        %s1642 = ssub.s32 %s15, 2
        // Predicated region
        $region45: #{tpu_custom_call.1} parent=43 // pred_check
          %p1643 = pneg %p118
        $region46: #{tpu_custom_call.1} parent=43 // pred_check_branch
          %1645 = sbr.rel (%p1643) target = $region48
        $region47: #{tpu_custom_call.1} parent=43 // pred_region
          %s1646 = sand.u32 %s103, 1
          %s1647 = scalar_lea.sflag [#allocation5], %s1646
          %s1648 = sand.u32 %s103, 1
          %s1649 = smul.addr %s1648, 128
          %s1650 = scalar_lea.vmem [#allocation8], %s1649
          %1652 = dma.done %s1647, 2048
        $region48: #{tpu_custom_call.1} parent=43 // pred_fallthru
          _
      $region44: #{tpu_custom_call.1} parent=5 // pred_fallthru
        _
    $region6: #{tpu_custom_call.1} parent=1 // loop_footer
      %s19 = sadd.s32 1, %s15
    $region7: #{tpu_custom_call.1} parent=1 // loop_footer_branch
      %14 = sbr.rel target = $region3
    $region8: #{tpu_custom_call.1} parent=1 // loop_exit
      _
    %1653 = vsyncpa [#allocation4], 1
    %s1654 = scalar_lea.sflag [#allocation4], 1
    %1655 = vsyncpa %s1654, 1
    %1656 = vsyncpa [#allocation5], 1
    %s1657 = scalar_lea.sflag [#allocation5], 1
    %1658 = vsyncpa %s1657, 1
    %1659 = vsyncpa [#allocation6], 1
    %s1660 = scalar_lea.sflag [#allocation6], 1
    %1661 = vsyncpa %s1660, 1

</llo_original>
